<compile_context>
chip_gen: v6e
topology: v6e:2x2x1
jax: 0.10.0
libtpu: 0.0.40
codegen_flags: <defaults>
</compile_context>

<pallas_src>
import functools

import jax
import jax.numpy as jnp
import numpy as np
from jax import lax
from jax.experimental import pallas as pl
from jax.experimental.pallas import tpu as pltpu


def _pick_tile_h(n_batch, h, w, target_rows, min_steps=4):
    """Pick TH = output image-rows per grid step.

    TH must divide H (every block is full -> no tail handling). Prefer the
    largest TH with TH*W <= target_rows that still leaves >= min_steps grid
    steps (so both v7x TensorCores see multiple steps); otherwise just the
    largest TH with TH*W <= target_rows; otherwise 1.
    """
    divisors = [d for d in range(h, 0, -1) if h % d == 0]
    for d in divisors:
        if d * w <= target_rows and n_batch * (h // d) >= min_steps:
            return d
    for d in divisors:
        if d * w <= target_rows:
            return d
    return 1


def _conv_bn_relu_kernel(x_ref, w_ref, b_ref, o_ref, *, row_stride, out_rows):
    """Fused 3x3 conv (3 dy taps) + folded-BN bias + ReLU for one row tile.

    x_ref: ((TH+2)*W, 3*Cin) bf16  dx-expanded slab rows (1-row halo each side)
    w_ref: (3, 3*Cin, Cout)  bf16  per-dy weights, BN scale pre-folded (f32 fold)
    b_ref: (1, Cout)         f32   folded BN/conv bias
    o_ref: (TH*W, Cout)      bf16  output tile
    """
    acc = jnp.dot(x_ref[0:out_rows, :], w_ref[0],
                  preferred_element_type=jnp.float32)
    acc = acc + jnp.dot(x_ref[row_stride:row_stride + out_rows, :], w_ref[1],
                        preferred_element_type=jnp.float32)
    acc = acc + jnp.dot(x_ref[2 * row_stride:2 * row_stride + out_rows, :],
                        w_ref[2], preferred_element_type=jnp.float32)
    out = acc + b_ref[...]                                   # folded BatchNorm
    o_ref[...] = jnp.maximum(out, 0.0).astype(o_ref.dtype)   # ReLU


def block_type1_forward(x_nchw, conv_w, conv_b, bn_gamma, bn_beta,
                        bn_mean, bn_var, eps=1e-5, target_tile_rows=1024):
    """x_nchw: (N, Cin, H, W) f32. Returns (N, Cout, H, W) f32 (eval-mode BN)."""
    N, Cin, H, W = x_nchw.shape
    Cout = conv_w.shape[0]
    K3 = 3 * Cin

    # ---- glue (plain JAX): NHWC (bf16), replicate pad, 3 dx-shifted slab ----
    x_nhwc = jnp.transpose(x_nchw, (0, 2, 3, 1)).astype(jnp.bfloat16)
    x_pad = jnp.pad(x_nhwc, ((0, 0), (1, 1), (1, 1), (0, 0)), mode="edge")
    # slab[n, hp, w, dx*Cin + c] = x_pad[n, hp, w + dx, c]
    x_dx = jnp.concatenate([x_pad[:, :, dx:dx + W, :] for dx in range(3)],
                           axis=-1)                          # (N, H+2, W, 3*Cin)

    # Weights OIHW -> (ky, kx, Cin, Cout) -> (3, 3*Cin, Cout); fold BN scale in f32.
    scale = bn_gamma / jnp.sqrt(bn_var + eps)                # (Cout,)
    w3 = jnp.transpose(conv_w, (2, 3, 1, 0)).reshape(3, K3, Cout)
    w3 = (w3 * scale[None, None, :]).astype(jnp.bfloat16)
    bias = (bn_beta - bn_mean * scale + conv_b * scale)
    bias = bias.reshape(1, Cout).astype(jnp.float32)

    # ---- row tiling: TH output rows per step, 1-row halo each side ----
    # Cap tile rows so the double-buffered activation + output tiles stay well
    # inside scoped VMEM (v5e default 16 MiB, v7x 64 MiB physical).
    bytes_per_row = K3 * 2 + Cout * 2
    target_rows = max(W, min(target_tile_rows,
                             (6 * 1024 * 1024) // max(bytes_per_row, 1)))
    TH = _pick_tile_h(N, H, W, target_rows=target_rows)
    n_th = H // TH
    S = N * n_th                               # grid steps, all full blocks
    slab_rows = (TH + 2) * W
    out_rows = TH * W

    if n_th == 1:
        x_tiles = x_dx.reshape(N, slab_rows, K3)
    else:
        # gather H-tiles (overlap = 2 halo rows per tile, i.e. 2/TH duplication)
        hidx = (jnp.arange(n_th)[:, None] * TH
                + jnp.arange(TH + 2)[None, :])               # (n_th, TH+2)
        x_tiles = x_dx[:, hidx].reshape(S, slab_rows, K3)

    kernel = functools.partial(_conv_bn_relu_kernel,
                               row_stride=W, out_rows=out_rows)

    flops = 2 * N * H * W * 9 * Cin * Cout
    bytes_accessed = (S * slab_rows * K3 * 2 + 3 * K3 * Cout * 2
                      + Cout * 4 + S * out_rows * Cout * 2)
    cost = pl.CostEstimate(flops=flops, transcendentals=0,
                           bytes_accessed=bytes_accessed)

    def _const_spec(shape, imap, single_buffer):
        if single_buffer:
            # Constant-index operands: one VMEM buffer is enough (saves VMEM).
            return pl.BlockSpec(shape, imap, pipeline_mode=pl.Buffered(1))
        return pl.BlockSpec(shape, imap)

    def _run(single_buffer_consts):
        return pl.pallas_call(
            kernel,
            out_shape=jax.ShapeDtypeStruct((S, out_rows, Cout), jnp.bfloat16),
            grid_spec=pltpu.PrefetchScalarGridSpec(
                num_scalar_prefetch=0,
                grid=(S,),
                in_specs=[
                    pl.BlockSpec((None, slab_rows, K3), lambda s: (s, 0, 0)),
                    _const_spec((3, K3, Cout), lambda s: (0, 0, 0),
                                single_buffer_consts),
                    _const_spec((1, Cout), lambda s: (0, 0),
                                single_buffer_consts),
                ],
                out_specs=pl.BlockSpec((None, out_rows, Cout),
                                       lambda s: (s, 0, 0)),
            ),
            compiler_params=pltpu.CompilerParams(
                dimension_semantics=("parallel",),
                vmem_limit_bytes=32 * 1024 * 1024),
            cost_estimate=cost,
        )(x_tiles, w3, bias)

    try:
        out_flat = _run(True)
    except Exception:
        # pipeline_mode / Buffered(1) not supported by this jax build:
        # fall back to default double-buffering of the constant operands.
        out_flat = _run(False)

    out = out_flat.reshape(N, H, W, Cout).astype(jnp.float32)
    return jnp.transpose(out, (0, 3, 1, 2))                  # back to NCHW


def reference_forward(x_nchw, conv_w, conv_b, bn_gamma, bn_beta,
                      bn_mean, bn_var, eps=1e-5):
    """Pure-JAX f32 reference (same semantics) for a correctness check."""
    x_nhwc = jnp.transpose(x_nchw, (0, 2, 3, 1))
    x_pad = jnp.pad(x_nhwc, ((0, 0), (1, 1), (1, 1), (0, 0)), mode="edge")
    w_hwio = jnp.transpose(conv_w, (2, 3, 1, 0))
    conv = lax.conv_general_dilated(
        x_pad, w_hwio, window_strides=(1, 1), padding="VALID",
        dimension_numbers=("NHWC", "HWIO", "NHWC"))
    conv = conv + conv_b
    scale = bn_gamma / jnp.sqrt(bn_var + eps)
    out = (conv - bn_mean) * scale + bn_beta
    out = jnp.maximum(out, 0.0)
    return jnp.transpose(out, (0, 3, 1, 2))


if __name__ == "__main__":
    # Small shapes consistent with the module: batch=2, inplanes=4, planes=8, 16x16.
    N, Cin, Cout, H, W = 2, 4, 8, 16, 16

    key = jax.random.PRNGKey(0)
    k_x, k_w, k_b, k_g, k_bt, k_m, k_v = jax.random.split(key, 7)

    x = jax.random.normal(k_x, (N, Cin, H, W), dtype=jnp.float32)

    # Deterministic parameter init (synthetic; not a checkpoint load).
    conv_w = 0.1 * jax.random.normal(k_w, (Cout, Cin, 3, 3), dtype=jnp.float32)
    conv_b = 0.05 * jax.random.normal(k_b, (Cout,), dtype=jnp.float32)
    bn_gamma = 1.0 + 0.1 * jax.random.normal(k_g, (Cout,), dtype=jnp.float32)
    bn_beta = 0.1 * jax.random.normal(k_bt, (Cout,), dtype=jnp.float32)
    bn_mean = 0.1 * jax.random.normal(k_m, (Cout,), dtype=jnp.float32)
    bn_var = jnp.abs(1.0 + 0.1 * jax.random.normal(k_v, (Cout,), dtype=jnp.float32))

    out = block_type1_forward(x, conv_w, conv_b, bn_gamma, bn_beta,
                              bn_mean, bn_var)
    out = jax.block_until_ready(out)

    ref = reference_forward(x, conv_w, conv_b, bn_gamma, bn_beta,
                            bn_mean, bn_var)
    ref = jax.block_until_ready(ref)

    assert out.shape == (N, Cout, H, W)
    # bf16 MXU inputs + bf16 kernel output vs f32 reference -> loosened tolerance.
    np.testing.assert_allclose(np.asarray(out), np.asarray(ref),
                               rtol=3e-2, atol=3e-2)
    print("KERNEL_OK")
</pallas_src>

<mosaic_0001>
module attributes {stable_mosaic.version = 11 : i64} {
  func.func @_conv_bn_relu_kernel(%arg0: i32, %arg1: memref<1x160x12xbf16, #tpu.memory_space<vmem>>, %arg2: memref<3x12x8xbf16, #tpu.memory_space<vmem>>, %arg3: memref<1x8xf32, #tpu.memory_space<vmem>>, %arg4: memref<1x128x8xbf16, #tpu.memory_space<vmem>>) attributes {dimension_semantics = [#tpu.dimension_semantics<parallel>], iteration_bounds = array<i64: 4>, scalar_prefetch = 0 : i64, scratch_operands = 0 : i64, tpu.core_type = #tpu.core_type<tc>, window_params = [{transform_indices = @transform_0, window_bounds = array<i64: 1, 160, 12>}, {pipeline_mode = #tpu.pipeline_mode<synchronous>, transform_indices = @transform_1, window_bounds = array<i64: 3, 12, 8>}, {pipeline_mode = #tpu.pipeline_mode<synchronous>, transform_indices = @transform_2, window_bounds = array<i64: 1, 8>}, {transform_indices = @transform_3, window_bounds = array<i64: 1, 128, 8>}]} {
    %c0 = arith.constant 0 : index
    %c0_0 = arith.constant 0 : index
    %c0_1 = arith.constant 0 : index
    %0 = vector.load %arg1[%c0, %c0_0, %c0_1] : memref<1x160x12xbf16, #tpu.memory_space<vmem>>, vector<1x128x12xbf16>
    %1 = vector.shape_cast %0 : vector<1x128x12xbf16> to vector<128x12xbf16>
    %c0_2 = arith.constant 0 : index
    %c0_3 = arith.constant 0 : index
    %c0_4 = arith.constant 0 : index
    %2 = vector.load %arg2[%c0_2, %c0_3, %c0_4] : memref<3x12x8xbf16, #tpu.memory_space<vmem>>, vector<1x12x8xbf16>
    %3 = vector.shape_cast %2 : vector<1x12x8xbf16> to vector<12x8xbf16>
    %cst = arith.constant dense<0.000000e+00> : vector<128x8xf32>
    %4 = tpu.matmul %1, %3, %cst {dimension_numbers = #tpu.dot_dimension_numbers<[1], [0], [0], [1], [0, 0, 1, 1], [], []>} : vector<128x12xbf16>, vector<12x8xbf16>, vector<128x8xf32> -> vector<128x8xf32>
    %c0_5 = arith.constant 0 : index
    %c16 = arith.constant 16 : index
    %c0_6 = arith.constant 0 : index
    %5 = vector.load %arg1[%c0_5, %c16, %c0_6] : memref<1x160x12xbf16, #tpu.memory_space<vmem>>, vector<1x128x12xbf16>
    %6 = vector.shape_cast %5 : vector<1x128x12xbf16> to vector<128x12xbf16>
    %c1 = arith.constant 1 : index
    %c0_7 = arith.constant 0 : index
    %c0_8 = arith.constant 0 : index
    %7 = vector.load %arg2[%c1, %c0_7, %c0_8] : memref<3x12x8xbf16, #tpu.memory_space<vmem>>, vector<1x12x8xbf16>
    %8 = vector.shape_cast %7 : vector<1x12x8xbf16> to vector<12x8xbf16>
    %cst_9 = arith.constant dense<0.000000e+00> : vector<128x8xf32>
    %9 = tpu.matmul %6, %8, %cst_9 {dimension_numbers = #tpu.dot_dimension_numbers<[1], [0], [0], [1], [0, 0, 1, 1], [], []>} : vector<128x12xbf16>, vector<12x8xbf16>, vector<128x8xf32> -> vector<128x8xf32>
    %10 = arith.addf %4, %9 : vector<128x8xf32>
    %c0_10 = arith.constant 0 : index
    %c32 = arith.constant 32 : index
    %c0_11 = arith.constant 0 : index
    %11 = vector.load %arg1[%c0_10, %c32, %c0_11] : memref<1x160x12xbf16, #tpu.memory_space<vmem>>, vector<1x128x12xbf16>
    %12 = vector.shape_cast %11 : vector<1x128x12xbf16> to vector<128x12xbf16>
    %c2 = arith.constant 2 : index
    %c0_12 = arith.constant 0 : index
    %c0_13 = arith.constant 0 : index
    %13 = vector.load %arg2[%c2, %c0_12, %c0_13] : memref<3x12x8xbf16, #tpu.memory_space<vmem>>, vector<1x12x8xbf16>
    %14 = vector.shape_cast %13 : vector<1x12x8xbf16> to vector<12x8xbf16>
    %cst_14 = arith.constant dense<0.000000e+00> : vector<128x8xf32>
    %15 = tpu.matmul %12, %14, %cst_14 {dimension_numbers = #tpu.dot_dimension_numbers<[1], [0], [0], [1], [0, 0, 1, 1], [], []>} : vector<128x12xbf16>, vector<12x8xbf16>, vector<128x8xf32> -> vector<128x8xf32>
    %16 = arith.addf %10, %15 : vector<128x8xf32>
    %c0_15 = arith.constant 0 : index
    %c0_16 = arith.constant 0 : index
    %17 = vector.load %arg3[%c0_15, %c0_16] : memref<1x8xf32, #tpu.memory_space<vmem>>, vector<1x8xf32>
    %18 = vector.broadcast %17 : vector<1x8xf32> to vector<128x8xf32>
    %19 = arith.addf %16, %18 : vector<128x8xf32>
    %cst_17 = arith.constant 0.000000e+00 : f32
    %20 = vector.broadcast %cst_17 : f32 to vector<128x8xf32>
    %21 = arith.maximumf %19, %20 : vector<128x8xf32>
    %22 = arith.truncf %21 : vector<128x8xf32> to vector<128x8xbf16>
    %c0_18 = arith.constant 0 : index
    %c0_19 = arith.constant 0 : index
    %c0_20 = arith.constant 0 : index
    %23 = vector.load %arg4[%c0_18, %c0_19, %c0_20] : memref<1x128x8xbf16, #tpu.memory_space<vmem>>, vector<1x128x8xbf16>
    %24 = vector.shape_cast %23 : vector<1x128x8xbf16> to vector<128x8xbf16>
    %25 = vector.shape_cast %22 : vector<128x8xbf16> to vector<1x128x8xbf16>
    tpu.vector_store %arg4[%c0_18, %c0_19, %c0_20], %25 {strides = array<i32>} : memref<1x128x8xbf16, #tpu.memory_space<vmem>>, vector<1x128x8xbf16>,
    return
  }
  func.func @transform_0(%arg0: i32) -> (i32, i32, i32) {
    %c0_i32 = arith.constant 0 : i32
    %c0_i32_0 = arith.constant 0 : i32
    %c0_i32_1 = arith.constant 0 : i32
    return %arg0, %c0_i32, %c0_i32_0 : i32, i32, i32
  }
  func.func @transform_1(%arg0: i32) -> (i32, i32, i32) {
    %c0_i32 = arith.constant 0 : i32
    %c0_i32_0 = arith.constant 0 : i32
    %c0_i32_1 = arith.constant 0 : i32
    %c0_i32_2 = arith.constant 0 : i32
    return %c0_i32, %c0_i32_0, %c0_i32_1 : i32, i32, i32
  }
  func.func @transform_2(%arg0: i32) -> (i32, i32) {
    %c0_i32 = arith.constant 0 : i32
    %c0_i32_0 = arith.constant 0 : i32
    %c0_i32_1 = arith.constant 0 : i32
    return %c0_i32, %c0_i32_0 : i32, i32
  }
  func.func @transform_3(%arg0: i32) -> (i32, i32, i32) {
    %c0_i32 = arith.constant 0 : i32
    %c0_i32_0 = arith.constant 0 : i32
    %c0_i32_1 = arith.constant 0 : i32
    return %arg0, %c0_i32, %c0_i32_0 : i32, i32, i32
  }
}

module attributes {stable_mosaic.version = 11 : i64} {
  func.func @_conv_bn_relu_kernel(%arg0: i32, %arg1: memref<1x160x12xbf16, #tpu.memory_space<vmem>>, %arg2: memref<3x12x8xbf16, #tpu.memory_space<vmem>>, %arg3: memref<1x8xf32, #tpu.memory_space<vmem>>, %arg4: memref<1x128x8xbf16, #tpu.memory_space<vmem>>) attributes {dimension_semantics = [#tpu.dimension_semantics<parallel>], iteration_bounds = array<i64: 4>, scalar_prefetch = 0 : i64, scratch_operands = 0 : i64, tpu.core_type = #tpu.core_type<tc>, window_params = [{transform_indices = @transform_0, window_bounds = array<i64: 1, 160, 12>}, {pipeline_mode = #tpu.pipeline_mode<synchronous>, transform_indices = @transform_1, window_bounds = array<i64: 3, 12, 8>}, {pipeline_mode = #tpu.pipeline_mode<synchronous>, transform_indices = @transform_2, window_bounds = array<i64: 1, 8>}, {transform_indices = @transform_3, window_bounds = array<i64: 1, 128, 8>}]} {
    %c0 = arith.constant 0 : index
    %c0_0 = arith.constant 0 : index
    %c0_1 = arith.constant 0 : index
    %0 = vector.load %arg1[%c0, %c0_0, %c0_1] : memref<1x160x12xbf16, #tpu.memory_space<vmem>>, vector<1x128x12xbf16>
    %1 = vector.shape_cast %0 : vector<1x128x12xbf16> to vector<128x12xbf16>
    %c0_2 = arith.constant 0 : index
    %c0_3 = arith.constant 0 : index
    %c0_4 = arith.constant 0 : index
    %2 = vector.load %arg2[%c0_2, %c0_3, %c0_4] : memref<3x12x8xbf16, #tpu.memory_space<vmem>>, vector<1x12x8xbf16>
    %3 = vector.shape_cast %2 : vector<1x12x8xbf16> to vector<12x8xbf16>
    %cst = arith.constant dense<0.000000e+00> : vector<128x8xf32>
    %4 = tpu.matmul %1, %3, %cst {dimension_numbers = #tpu.dot_dimension_numbers<[1], [0], [0], [1], [0, 0, 1, 1], [], []>} : vector<128x12xbf16>, vector<12x8xbf16>, vector<128x8xf32> -> vector<128x8xf32>
    %c0_5 = arith.constant 0 : index
    %c16 = arith.constant 16 : index
    %c0_6 = arith.constant 0 : index
    %5 = vector.load %arg1[%c0_5, %c16, %c0_6] : memref<1x160x12xbf16, #tpu.memory_space<vmem>>, vector<1x128x12xbf16>
    %6 = vector.shape_cast %5 : vector<1x128x12xbf16> to vector<128x12xbf16>
    %c1 = arith.constant 1 : index
    %c0_7 = arith.constant 0 : index
    %c0_8 = arith.constant 0 : index
    %7 = vector.load %arg2[%c1, %c0_7, %c0_8] : memref<3x12x8xbf16, #tpu.memory_space<vmem>>, vector<1x12x8xbf16>
    %8 = vector.shape_cast %7 : vector<1x12x8xbf16> to vector<12x8xbf16>
    %cst_9 = arith.constant dense<0.000000e+00> : vector<128x8xf32>
    %9 = tpu.matmul %6, %8, %cst_9 {dimension_numbers = #tpu.dot_dimension_numbers<[1], [0], [0], [1], [0, 0, 1, 1], [], []>} : vector<128x12xbf16>, vector<12x8xbf16>, vector<128x8xf32> -> vector<128x8xf32>
    %10 = arith.addf %4, %9 : vector<128x8xf32>
    %c0_10 = arith.constant 0 : index
    %c32 = arith.constant 32 : index
    %c0_11 = arith.constant 0 : index
    %11 = vector.load %arg1[%c0_10, %c32, %c0_11] : memref<1x160x12xbf16, #tpu.memory_space<vmem>>, vector<1x128x12xbf16>
    %12 = vector.shape_cast %11 : vector<1x128x12xbf16> to vector<128x12xbf16>
    %c2 = arith.constant 2 : index
    %c0_12 = arith.constant 0 : index
    %c0_13 = arith.constant 0 : index
    %13 = vector.load %arg2[%c2, %c0_12, %c0_13] : memref<3x12x8xbf16, #tpu.memory_space<vmem>>, vector<1x12x8xbf16>
    %14 = vector.shape_cast %13 : vector<1x12x8xbf16> to vector<12x8xbf16>
    %cst_14 = arith.constant dense<0.000000e+00> : vector<128x8xf32>
    %15 = tpu.matmul %12, %14, %cst_14 {dimension_numbers = #tpu.dot_dimension_numbers<[1], [0], [0], [1], [0, 0, 1, 1], [], []>} : vector<128x12xbf16>, vector<12x8xbf16>, vector<128x8xf32> -> vector<128x8xf32>
    %16 = arith.addf %10, %15 : vector<128x8xf32>
    %c0_15 = arith.constant 0 : index
    %c0_16 = arith.constant 0 : index
    %17 = vector.load %arg3[%c0_15, %c0_16] : memref<1x8xf32, #tpu.memory_space<vmem>>, vector<1x8xf32>
    %18 = vector.broadcast %17 : vector<1x8xf32> to vector<128x8xf32>
    %19 = arith.addf %16, %18 : vector<128x8xf32>
    %cst_17 = arith.constant 0.000000e+00 : f32
    %20 = vector.broadcast %cst_17 : f32 to vector<128x8xf32>
    %21 = arith.maximumf %19, %20 : vector<128x8xf32>
    %22 = arith.truncf %21 : vector<128x8xf32> to vector<128x8xbf16>
    %c0_18 = arith.constant 0 : index
    %c0_19 = arith.constant 0 : index
    %c0_20 = arith.constant 0 : index
    %23 = vector.load %arg4[%c0_18, %c0_19, %c0_20] : memref<1x128x8xbf16, #tpu.memory_space<vmem>>, vector<1x128x8xbf16>
    %24 = vector.shape_cast %23 : vector<1x128x8xbf16> to vector<128x8xbf16>
    %25 = vector.shape_cast %22 : vector<128x8xbf16> to vector<1x128x8xbf16>
    tpu.vector_store %arg4[%c0_18, %c0_19, %c0_20], %25 {strides = array<i32>} : memref<1x128x8xbf16, #tpu.memory_space<vmem>>, vector<1x128x8xbf16>,
    return
  }
  func.func @transform_0(%arg0: i32) -> (i32, i32, i32) {
    %c0_i32 = arith.constant 0 : i32
    %c0_i32_0 = arith.constant 0 : i32
    %c0_i32_1 = arith.constant 0 : i32
    return %arg0, %c0_i32, %c0_i32_0 : i32, i32, i32
  }
  func.func @transform_1(%arg0: i32) -> (i32, i32, i32) {
    %c0_i32 = arith.constant 0 : i32
    %c0_i32_0 = arith.constant 0 : i32
    %c0_i32_1 = arith.constant 0 : i32
    %c0_i32_2 = arith.constant 0 : i32
    return %c0_i32, %c0_i32_0, %c0_i32_1 : i32, i32, i32
  }
  func.func @transform_2(%arg0: i32) -> (i32, i32) {
    %c0_i32 = arith.constant 0 : i32
    %c0_i32_0 = arith.constant 0 : i32
    %c0_i32_1 = arith.constant 0 : i32
    return %c0_i32, %c0_i32_0 : i32, i32
  }
  func.func @transform_3(%arg0: i32) -> (i32, i32, i32) {
    %c0_i32 = arith.constant 0 : i32
    %c0_i32_0 = arith.constant 0 : i32
    %c0_i32_1 = arith.constant 0 : i32
    return %arg0, %c0_i32, %c0_i32_0 : i32, i32, i32
  }
}

</mosaic_0001>

<llo_original>
// kernel: tpu_custom_call.1
$region0: #{tpu_custom_call.1}
  #allocation0 [shape = 'u32[]', space=smem, size = 0x4, offset = 0x4, fixed_abs, tag = 'smem constant byte address 0x4 - core index']
  #allocation1 [shape = 'u32[144,128]{1,0:T(1,128)}', space=vmem, size = 0x12000, scoped, tag = 'internal scratch']
  %s0 = inlined_call_operand.vmem [shape: bf16[4,160,12], index: 0, kind: input, shape index: {}]
  %s1 = inlined_call_operand.vmem [shape: bf16[3,12,8], index: 1, kind: input, shape index: {}]
  %s2 = inlined_call_operand.vmem [shape: f32[1,8], index: 2, kind: input, shape index: {}]
  %s3 = inlined_call_operand.vmem [shape: bf16[4,128,8], index: 3, kind: output, shape index: {}]
  %s4 = sld [smem:[#allocation0]]
  $region45: #{tpu_custom_call.1} parent=0
    _
  %s6 = ssub.s32 1, %s4
  %s7 = scalar_select 0, %s6, %s4
  loop: start=0, step=1, limit=6
  $region2: #{tpu_custom_call.1} parent=0 // loop_pre_header
    _
  $region3: #{tpu_custom_call.1} parent=0 // loop_header
    %s9 = sphi 0, %s13
    %p10 = scmp.ge.s32.totalorder %s9, 6
    %s19 = sphi 0, %s21
    %s22 = sphi 0, %s19
    %s23 = sphi 0, %s22
    %s39 = sphi 0, %s23
    %s43 = sphi 0, %s43
    %s45 = sphi 0, %s43
    %s46 = sphi 0, %s45
    %s60 = sphi 0, %s46
    %s64 = sphi 0, %s64
    %s66 = sphi 0, %s64
    %s67 = sphi 0, %s66
    %s81 = sphi 0, %s67
    %s87 = sphi 0, %s89
    %s90 = sphi 0, %s87
    %s91 = sphi 0, %s90
    %s107 = sphi 0, %s91
  $region4: #{tpu_custom_call.1} parent=0 // loop_header_branch
    %12 = sbr.rel (%p10) target = $region8
  $region5: #{tpu_custom_call.1} parent=0 // loop_body
    %s14 = ssub.s32 %s9, 1
    %s15 = ssub.s32 %s9, 2
    %s16 = sadd.s32 %s9, 1
    %s17 = ssub.s32 %s9, %s16
    %p18 = scmp.eq.s32.totalorder %s17, 0
    %s20 = sadd.s32 %s19, 1
    %s21 = scalar_select %p18, %s19, %s20
    %p24 = pneg %p18
    %p25 = scmp.eq.s32.totalorder %s9, 3
    %p26 = por %p24, %p25
    %p27 = scmp.ne.s32.totalorder %s19, %s22
    %p28 = scmp.eq.s32.totalorder %s9, 0
    %p29 = por %p27, %p28
    %p30 = scmp.ne.s32.totalorder %s19, %s22
    %p31 = scmp.eq.s32.totalorder %s14, 3
    %p32 = por %p30, %p31
    %p33 = scmp.ne.s32.totalorder %s22, %s23
    %p34 = scmp.eq.s32.totalorder %s14, 0
    %p35 = por %p33, %p34
    %p36 = scmp.ne.s32.totalorder %s22, %s23
    %p37 = scmp.eq.s32.totalorder %s15, 3
    %p38 = por %p36, %p37
    %p40 = scmp.ne.s32.totalorder %s23, %s39
    %p41 = scmp.eq.s32.totalorder %s15, 0
    %p42 = por %p40, %p41
    %s44 = sadd.s32 %s43, 1
    %p47 = scmp.eq.s32.totalorder %s9, 3
    %p48 = scmp.ne.s32.totalorder %s43, %s45
    %p49 = scmp.eq.s32.totalorder %s9, 0
    %p50 = por %p48, %p49
    %p51 = scmp.ne.s32.totalorder %s43, %s45
    %p52 = scmp.eq.s32.totalorder %s14, 3
    %p53 = por %p51, %p52
    %p54 = scmp.ne.s32.totalorder %s45, %s46
    %p55 = scmp.eq.s32.totalorder %s14, 0
    %p56 = por %p54, %p55
    %p57 = scmp.ne.s32.totalorder %s45, %s46
    %p58 = scmp.eq.s32.totalorder %s15, 3
    %p59 = por %p57, %p58
    %p61 = scmp.ne.s32.totalorder %s46, %s60
    %p62 = scmp.eq.s32.totalorder %s15, 0
    %p63 = por %p61, %p62
    %s65 = sadd.s32 %s64, 1
    %p68 = scmp.eq.s32.totalorder %s9, 3
    %p69 = scmp.ne.s32.totalorder %s64, %s66
    %p70 = scmp.eq.s32.totalorder %s9, 0
    %p71 = por %p69, %p70
    %p72 = scmp.ne.s32.totalorder %s64, %s66
    %p73 = scmp.eq.s32.totalorder %s14, 3
    %p74 = por %p72, %p73
    %p75 = scmp.ne.s32.totalorder %s66, %s67
    %p76 = scmp.eq.s32.totalorder %s14, 0
    %p77 = por %p75, %p76
    %p78 = scmp.ne.s32.totalorder %s66, %s67
    %p79 = scmp.eq.s32.totalorder %s15, 3
    %p80 = por %p78, %p79
    %p82 = scmp.ne.s32.totalorder %s67, %s81
    %p83 = scmp.eq.s32.totalorder %s15, 0
    %p84 = por %p82, %p83
    %s85 = ssub.s32 %s9, %s16
    %p86 = scmp.eq.s32.totalorder %s85, 0
    %s88 = sadd.s32 %s87, 1
    %s89 = scalar_select %p86, %s87, %s88
    %p92 = pneg %p86
    %p93 = scmp.eq.s32.totalorder %s9, 3
    %p94 = por %p92, %p93
    %p95 = scmp.ne.s32.totalorder %s87, %s90
    %p96 = scmp.eq.s32.totalorder %s9, 0
    %p97 = por %p95, %p96
    %p98 = scmp.ne.s32.totalorder %s87, %s90
    %p99 = scmp.eq.s32.totalorder %s14, 3
    %p100 = por %p98, %p99
    %p101 = scmp.ne.s32.totalorder %s90, %s91
    %p102 = scmp.eq.s32.totalorder %s14, 0
    %p103 = por %p101, %p102
    %p104 = scmp.ne.s32.totalorder %s90, %s91
    %p105 = scmp.eq.s32.totalorder %s15, 3
    %p106 = por %p104, %p105
    %p108 = scmp.ne.s32.totalorder %s91, %s107
    %p109 = scmp.eq.s32.totalorder %s15, 0
    %p110 = por %p108, %p109
    %p111 = scmp.le.s32.totalorder 1, %s9
    %p112 = scmp.lt.s32.totalorder %s9, 5
    %p113 = pnand %p111, %p112
    %p114 = pneg %p113
    // Predicated region
    $region9: #{tpu_custom_call.1} parent=5 // pred_check
      _
    $region10: #{tpu_custom_call.1} parent=5 // pred_check_branch
      %116 = sbr.rel (%p113) target = $region12
    $region11: #{tpu_custom_call.1} parent=5 // pred_region
      %s117 = ssub.s32 %s9, 1
      // Predicated region
      $region13: #{tpu_custom_call.1} parent=11 // pred_check
        %p118 = pneg %p56
      $region14: #{tpu_custom_call.1} parent=11 // pred_check_branch
        %120 = sbr.rel (%p118) target = $region16
      $region15: #{tpu_custom_call.1} parent=11 // pred_region
        _
      $region16: #{tpu_custom_call.1} parent=11 // pred_fallthru
        _
      // Predicated region
      $region17: #{tpu_custom_call.1} parent=11 // pred_check
        %p121 = pneg %p77
      $region18: #{tpu_custom_call.1} parent=11 // pred_check_branch
        %123 = sbr.rel (%p121) target = $region20
      $region19: #{tpu_custom_call.1} parent=11 // pred_region
        _
      $region20: #{tpu_custom_call.1} parent=11 // pred_fallthru
        _
    $region12: #{tpu_custom_call.1} parent=5 // pred_fallthru
      _
    %p124 = scmp.lt.s32.totalorder %s9, 4
    // Predicated region
    $region21: #{tpu_custom_call.1} parent=5 // pred_check
      %p125 = pneg %p124
    $region22: #{tpu_custom_call.1} parent=5 // pred_check_branch
      %127 = sbr.rel (%p125) target = $region24
    $region23: #{tpu_custom_call.1} parent=5 // pred_region
      // Predicated region
      $region25: #{tpu_custom_call.1} parent=23 // pred_check
        %p128 = pneg %p29
      $region26: #{tpu_custom_call.1} parent=23 // pred_check_branch
        %130 = sbr.rel (%p128) target = $region28
      $region27: #{tpu_custom_call.1} parent=23 // pred_region
        %p131 = scmp.lt.s32.totalorder %s9, 3
        %s132 = scalar_select %p131, %s9, 3
        %s133 = smul.addr %s132, 20
        %s134 = smul.addr %s133, 4
        %s135 = scalar_lea.vmem %s0, %s134
      $region28: #{tpu_custom_call.1} parent=23 // pred_fallthru
        _
    $region24: #{tpu_custom_call.1} parent=5 // pred_fallthru
      _
    %p136 = scmp.le.s32.totalorder 1, %s9
    %p137 = scmp.lt.s32.totalorder %s9, 5
    %p138 = pnand %p136, %p137
    %p139 = pneg %p138
    // Predicated region
    $region29: #{tpu_custom_call.1} parent=5 // pred_check
      _
    $region30: #{tpu_custom_call.1} parent=5 // pred_check_branch
      %141 = sbr.rel (%p138) target = $region32
    $region31: #{tpu_custom_call.1} parent=5 // pred_region
      %s142 = ssub.s32 %s9, 1
      %p143 = scmp.lt.s32.totalorder %s14, 3
      %s144 = scalar_select %p143, %s14, 3
      %s145 = smul.addr %s144, 20
      %s146 = smul.addr %s145, 4
      %s147 = scalar_lea.vmem %s0, %s146
      %p148 = pneg %p35
      %p149 = pneg %p32
      %p150 = pneg %p56
      %p151 = pneg %p53
      %p152 = pneg %p77
      %p153 = pneg %p74
      %p154 = pneg %p103
      %p155 = pneg %p100
      %p156 = scmp.lt.s32.totalorder %s14, 3
      %s157 = scalar_select %p156, %s14, 3
      %s158 = smul.addr %s157, 16
      %s159 = smul.addr %s158, 4
      %s160 = scalar_lea.vmem %s3, %s159
      %p161 = scmp.lt.s32.totalorder %s14, 3
      %s162 = scalar_select %p161, %s14, 3
      %s163 = smul.addr %s162, 20
      %s164 = smul.addr %s163, 4
      %s165 = scalar_lea.vmem %s0, %s164
      %p166 = scmp.lt.s32.totalorder %s14, 3
      %s167 = scalar_select %p166, %s14, 3
      %s168 = smul.addr %s167, 16
      %s169 = smul.addr %s168, 4
      %s170 = scalar_lea.vmem %s3, %s169
      %v172 = vld [vmem:[%s165] sm:$0xf]
      %v173 = vld [vmem:[%s165 + $0x4] sm:$0xf]
      %v174 = vld [vmem:[%s165 + $0x8] sm:$0xf]
      %v175 = vld [vmem:[%s165 + $0xc] sm:$0xf]
      %v176 = vld [vmem:[%s165 + $0x10] sm:$0xf]
      %v177 = vld [vmem:[%s165 + $0x14] sm:$0xf]
      %v178 = vld [vmem:[%s165 + $0x18] sm:$0xf]
      %v179 = vld [vmem:[%s165 + $0x1c] sm:$0xf]
      %v180 = vld [vmem:[%s165 + $0x20] sm:$0xf]
      %v181 = vld [vmem:[%s165 + $0x24] sm:$0xf]
      %v182 = vld [vmem:[%s165 + $0x28] sm:$0xf]
      %v183 = vld [vmem:[%s165 + $0x2c] sm:$0xf]
      %v184 = vld [vmem:[%s165 + $0x30] sm:$0xf]
      %v185 = vld [vmem:[%s165 + $0x34] sm:$0xf]
      %v186 = vld [vmem:[%s165 + $0x38] sm:$0xf]
      %v187 = vld [vmem:[%s165 + $0x3c] sm:$0xf]
      %v188 = vld [vmem:[%s1] sm:$0xf]
      %v189 = vld [vmem:[%s1 + $0x4] sm:$0x3]
      %v190 = vld [vmem:[%s165 + $0x40] sm:$0xf]
      %v191 = vld [vmem:[%s165 + $0x44] sm:$0xf]
      %s192 = scalar_lea.vmem %s1, 8
      %v193 = vld [vmem:[%s192] sm:$0xf]
      %v194 = vld [vmem:[%s192 + $0x4] sm:$0x3]
      %v211 = vunpack.c.l.b16 %v174
      %v212 = vunpack.c.l.b16 %v175
      %v213 = vunpack.c.l.b16 %v176
      %v214 = vunpack.c.l.b16 %v177
      %v215 = vunpack.c.l.b16 %v178
      %v216 = vunpack.c.l.b16 %v179
      %v217 = vunpack.c.l.b16 %v180
      %v218 = vunpack.c.l.b16 %v181
      %v219 = vunpack.c.l.b16 %v182
      %v220 = vunpack.c.l.b16 %v183
      %v221 = vunpack.c.l.b16 %v184
      %v222 = vunpack.c.l.b16 %v185
      %v223 = vunpack.c.l.b16 %v186
      %v224 = vunpack.c.l.b16 %v187
      %v225 = vunpack.c.l.b16 %v190
      %v226 = vunpack.c.l.b16 %v191
      %v227 = vpack.c.b16 %v212, %v211
      %v228 = vpack.c.b16 %v214, %v213
      %v229 = vpack.c.b16 %v216, %v215
      %v230 = vpack.c.b16 %v218, %v217
      %v231 = vpack.c.b16 %v220, %v219
      %v232 = vpack.c.b16 %v222, %v221
      %v233 = vpack.c.b16 %v224, %v223
      %v234 = vpack.c.b16 %v226, %v225
      %v237 = vunpack.c.l.b16 %v193
      %v238 = vunpack.c.l.b16 %v194
      %v239 = vpack.c.b16 %v238, %v237
      %vm240 = vcmask 97280
      %v242 = vsel %vm240, %v227, 0
      %v245 = vsel %vm240, %v228, 0
      %v248 = vsel %vm240, %v229, 0
      %v251 = vsel %vm240, %v230, 0
      %v254 = vsel %vm240, %v231, 0
      %v257 = vsel %vm240, %v232, 0
      %v260 = vsel %vm240, %v233, 0
      %v263 = vsel %vm240, %v234, 0
      %vm265 = vcmask 1045504
      %v267 = vsel %vm265, %v239, 0
      %269 = vmatprep.subr.bf16.mxu0 0
      %270 = vmatpush1.bf16.msra.mxu0 0
      %271 = vmatprep.subr.bf16.mxu0 0
      %272 = vmatpush1.bf16.msra.mxu0 0
      %273 = vmatprep.subr.bf16.mxu0 0
      %274 = vmatpush1.bf16.msra.mxu0 0
      %275 = vmatprep.subr.bf16.mxu0 0
      %276 = vmatpush1.bf16.msra.mxu0 0
      %277 = vmatprep.subr.bf16.mxu0 0
      %278 = vmatpush1.bf16.msra.mxu0 0
      %279 = vmatprep.subr.bf16.mxu0 0
      %280 = vmatpush1.bf16.msra.mxu0 0
      %281 = vmatprep.subr.bf16.mxu0 0
      %282 = vmatpush1.bf16.msra.mxu0 0
      %283 = vmatprep.subr.bf16.mxu0 0
      %284 = vmatpush1.bf16.msra.mxu0 %v267
      %285 = vmatprep.subr.bf16.mxu0 0
      %286 = vmatpush2.bf16.msra.mxu0 0
      %287 = vmatprep.subr.bf16.mxu0 0
      %288 = vmatpush2.bf16.msra.mxu0 0
      %289 = vmatprep.subr.bf16.mxu0 0
      %290 = vmatpush2.bf16.msra.mxu0 0
      %291 = vmatprep.subr.bf16.mxu0 0
      %292 = vmatpush2.bf16.msra.mxu0 0
      %293 = vmatprep.subr.bf16.mxu0 0
      %294 = vmatpush2.bf16.msra.mxu0 0
      %295 = vmatprep.subr.bf16.mxu0 0
      %296 = vmatpush2.bf16.msra.mxu0 0
      %297 = vmatprep.subr.bf16.mxu0 0
      %298 = vmatpush2.bf16.msra.mxu0 0
      %299 = vmatprep.subr.bf16.mxu0 0
      %300 = vmatpush2.bf16.msra.mxu0 0
      %301 = vmatprep.mubr.bf16.mxu0 0
      %302 = vmatmul.mubr.bf16.gmra.mxu0 %v242
      %v303 = vpop.f32.mrf.mxu0
      %v304 = vadd.f32 0.0, %v303
      %v305 = vpop.f32.mrf.mxu0
      %v306 = vpop.f32.mrf.mxu0
      %v307 = vadd.f32 0.0, %v306
      %v308 = vpop.f32.mrf.mxu0
      %309 = vmatprep.mubr.bf16.mxu0 0
      %310 = vmatmul.mubr.bf16.gmra.mxu0 %v245
      %v311 = vpop.f32.mrf.mxu0
      %v312 = vadd.f32 0.0, %v311
      %v313 = vpop.f32.mrf.mxu0
      %v314 = vpop.f32.mrf.mxu0
      %v315 = vadd.f32 0.0, %v314
      %v316 = vpop.f32.mrf.mxu0
      %317 = vmatprep.mubr.bf16.mxu0 0
      %318 = vmatmul.mubr.bf16.gmra.mxu0 %v248
      %v319 = vpop.f32.mrf.mxu0
      %v320 = vadd.f32 0.0, %v319
      %v321 = vpop.f32.mrf.mxu0
      %v322 = vpop.f32.mrf.mxu0
      %v323 = vadd.f32 0.0, %v322
      %v324 = vpop.f32.mrf.mxu0
      %325 = vmatprep.mubr.bf16.mxu0 0
      %326 = vmatmul.mubr.bf16.gmra.mxu0 %v251
      %v327 = vpop.f32.mrf.mxu0
      %v328 = vadd.f32 0.0, %v327
      %v329 = vpop.f32.mrf.mxu0
      %v330 = vpop.f32.mrf.mxu0
      %v331 = vadd.f32 0.0, %v330
      %v332 = vpop.f32.mrf.mxu0
      %333 = vmatprep.mubr.bf16.mxu0 0
      %334 = vmatmul.mubr.bf16.gmra.mxu0 %v254
      %v335 = vpop.f32.mrf.mxu0
      %v336 = vadd.f32 0.0, %v335
      %v337 = vpop.f32.mrf.mxu0
      %v338 = vpop.f32.mrf.mxu0
      %v339 = vadd.f32 0.0, %v338
      %v340 = vpop.f32.mrf.mxu0
      %341 = vmatprep.mubr.bf16.mxu0 0
      %342 = vmatmul.mubr.bf16.gmra.mxu0 %v257
      %v343 = vpop.f32.mrf.mxu0
      %v344 = vadd.f32 0.0, %v343
      %v345 = vpop.f32.mrf.mxu0
      %v346 = vpop.f32.mrf.mxu0
      %v347 = vadd.f32 0.0, %v346
      %v348 = vpop.f32.mrf.mxu0
      %349 = vmatprep.mubr.bf16.mxu0 0
      %350 = vmatmul.mubr.bf16.gmra.mxu0 %v260
      %v351 = vpop.f32.mrf.mxu0
      %v352 = vadd.f32 0.0, %v351
      %v353 = vpop.f32.mrf.mxu0
      %v354 = vpop.f32.mrf.mxu0
      %v355 = vadd.f32 0.0, %v354
      %v356 = vpop.f32.mrf.mxu0
      %357 = vmatprep.mubr.bf16.mxu0 0
      %358 = vmatmul.mubr.bf16.gmra.mxu0 %v263
      %v359 = vpop.f32.mrf.mxu0
      %v360 = vadd.f32 0.0, %v359
      %v361 = vpop.f32.mrf.mxu0
      %v362 = vpop.f32.mrf.mxu0
      %v363 = vadd.f32 0.0, %v362
      %v364 = vpop.f32.mrf.mxu0
      %365 = vdwg.mxu0
      %v368 = vunpack.c.l.b16 %v172
      %v369 = vunpack.c.l.b16 %v173
      %v370 = vpack.c.b16 %v369, %v368
      %v373 = vunpack.c.l.b16 %v188
      %v374 = vunpack.c.l.b16 %v189
      %v375 = vpack.c.b16 %v374, %v373
      %v377 = vsel %vm240, %v370, 0
      %v380 = vsel %vm265, %v375, 0
      %382 = vmatprep.subr.bf16.mxu0 0
      %383 = vmatpush1.bf16.msra.mxu0 0
      %384 = vmatprep.subr.bf16.mxu0 0
      %385 = vmatpush1.bf16.msra.mxu0 0
      %386 = vmatprep.subr.bf16.mxu0 0
      %387 = vmatpush1.bf16.msra.mxu0 0
      %388 = vmatprep.subr.bf16.mxu0 0
      %389 = vmatpush1.bf16.msra.mxu0 0
      %390 = vmatprep.subr.bf16.mxu0 0
      %391 = vmatpush1.bf16.msra.mxu0 0
      %392 = vmatprep.subr.bf16.mxu0 0
      %393 = vmatpush1.bf16.msra.mxu0 0
      %394 = vmatprep.subr.bf16.mxu0 0
      %395 = vmatpush1.bf16.msra.mxu0 0
      %396 = vmatprep.subr.bf16.mxu0 0
      %397 = vmatpush1.bf16.msra.mxu0 %v380
      %398 = vmatprep.subr.bf16.mxu0 0
      %399 = vmatpush2.bf16.msra.mxu0 0
      %400 = vmatprep.subr.bf16.mxu0 0
      %401 = vmatpush2.bf16.msra.mxu0 0
      %402 = vmatprep.subr.bf16.mxu0 0
      %403 = vmatpush2.bf16.msra.mxu0 0
      %404 = vmatprep.subr.bf16.mxu0 0
      %405 = vmatpush2.bf16.msra.mxu0 0
      %406 = vmatprep.subr.bf16.mxu0 0
      %407 = vmatpush2.bf16.msra.mxu0 0
      %408 = vmatprep.subr.bf16.mxu0 0
      %409 = vmatpush2.bf16.msra.mxu0 0
      %410 = vmatprep.subr.bf16.mxu0 0
      %411 = vmatpush2.bf16.msra.mxu0 0
      %412 = vmatprep.subr.bf16.mxu0 0
      %413 = vmatpush2.bf16.msra.mxu0 0
      %414 = vmatprep.mubr.bf16.mxu0 0
      %415 = vmatmul.mubr.bf16.gmra.mxu0 %v377
      %v416 = vpop.f32.mrf.mxu0
      %v417 = vadd.f32 %v304, %v416
      %v418 = vpop.f32.mrf.mxu0
      %v419 = vpop.f32.mrf.mxu0
      %v420 = vadd.f32 %v307, %v419
      %v421 = vpop.f32.mrf.mxu0
      %422 = vmatprep.mubr.bf16.mxu0 0
      %423 = vmatmul.mubr.bf16.gmra.mxu0 %v242
      %v424 = vpop.f32.mrf.mxu0
      %v425 = vadd.f32 %v312, %v424
      %v426 = vpop.f32.mrf.mxu0
      %v427 = vpop.f32.mrf.mxu0
      %v428 = vadd.f32 %v315, %v427
      %v429 = vpop.f32.mrf.mxu0
      %430 = vmatprep.mubr.bf16.mxu0 0
      %431 = vmatmul.mubr.bf16.gmra.mxu0 %v245
      %v432 = vpop.f32.mrf.mxu0
      %v433 = vadd.f32 %v320, %v432
      %v434 = vpop.f32.mrf.mxu0
      %v435 = vpop.f32.mrf.mxu0
      %v436 = vadd.f32 %v323, %v435
      %v437 = vpop.f32.mrf.mxu0
      %438 = vmatprep.mubr.bf16.mxu0 0
      %439 = vmatmul.mubr.bf16.gmra.mxu0 %v248
      %v440 = vpop.f32.mrf.mxu0
      %v441 = vadd.f32 %v328, %v440
      %v442 = vpop.f32.mrf.mxu0
      %v443 = vpop.f32.mrf.mxu0
      %v444 = vadd.f32 %v331, %v443
      %v445 = vpop.f32.mrf.mxu0
      %446 = vmatprep.mubr.bf16.mxu0 0
      %447 = vmatmul.mubr.bf16.gmra.mxu0 %v251
      %v448 = vpop.f32.mrf.mxu0
      %v449 = vadd.f32 %v336, %v448
      %v450 = vpop.f32.mrf.mxu0
      %v451 = vpop.f32.mrf.mxu0
      %v452 = vadd.f32 %v339, %v451
      %v453 = vpop.f32.mrf.mxu0
      %454 = vmatprep.mubr.bf16.mxu0 0
      %455 = vmatmul.mubr.bf16.gmra.mxu0 %v254
      %v456 = vpop.f32.mrf.mxu0
      %v457 = vadd.f32 %v344, %v456
      %v458 = vpop.f32.mrf.mxu0
      %v459 = vpop.f32.mrf.mxu0
      %v460 = vadd.f32 %v347, %v459
      %v461 = vpop.f32.mrf.mxu0
      %462 = vmatprep.mubr.bf16.mxu0 0
      %463 = vmatmul.mubr.bf16.gmra.mxu0 %v257
      %v464 = vpop.f32.mrf.mxu0
      %v465 = vadd.f32 %v352, %v464
      %v466 = vpop.f32.mrf.mxu0
      %v467 = vpop.f32.mrf.mxu0
      %v468 = vadd.f32 %v355, %v467
      %v469 = vpop.f32.mrf.mxu0
      %470 = vmatprep.mubr.bf16.mxu0 0
      %471 = vmatmul.mubr.bf16.gmra.mxu0 %v260
      %v472 = vpop.f32.mrf.mxu0
      %v473 = vadd.f32 %v360, %v472
      %v474 = vpop.f32.mrf.mxu0
      %v475 = vpop.f32.mrf.mxu0
      %v476 = vadd.f32 %v363, %v475
      %v477 = vpop.f32.mrf.mxu0
      %478 = vdwg.mxu0
      %v479 = vld [vmem:[%s165 + $0x10] sm:$0xf]
      %v480 = vld [vmem:[%s165 + $0x14] sm:$0xf]
      %v481 = vld [vmem:[%s165 + $0x18] sm:$0xf]
      %v482 = vld [vmem:[%s165 + $0x1c] sm:$0xf]
      %v483 = vld [vmem:[%s165 + $0x20] sm:$0xf]
      %v484 = vld [vmem:[%s165 + $0x24] sm:$0xf]
      %v485 = vld [vmem:[%s165 + $0x28] sm:$0xf]
      %v486 = vld [vmem:[%s165 + $0x2c] sm:$0xf]
      %v487 = vld [vmem:[%s165 + $0x30] sm:$0xf]
      %v488 = vld [vmem:[%s165 + $0x34] sm:$0xf]
      %v489 = vld [vmem:[%s165 + $0x38] sm:$0xf]
      %v490 = vld [vmem:[%s165 + $0x3c] sm:$0xf]
      %v491 = vld [vmem:[%s165 + $0x40] sm:$0xf]
      %v492 = vld [vmem:[%s165 + $0x44] sm:$0xf]
      %v493 = vld [vmem:[%s165 + $0x48] sm:$0xf]
      %v494 = vld [vmem:[%s165 + $0x4c] sm:$0xf]
      %s495 = scalar_lea.vmem %s1, 16
      %v496 = vld [vmem:[%s495] sm:$0xf]
      %v497 = vld [vmem:[%s495 + $0x4] sm:$0x3]
      %v514 = vunpack.c.l.b16 %v479
      %v515 = vunpack.c.l.b16 %v480
      %v516 = vunpack.c.l.b16 %v481
      %v517 = vunpack.c.l.b16 %v482
      %v518 = vunpack.c.l.b16 %v483
      %v519 = vunpack.c.l.b16 %v484
      %v520 = vunpack.c.l.b16 %v485
      %v521 = vunpack.c.l.b16 %v486
      %v522 = vunpack.c.l.b16 %v487
      %v523 = vunpack.c.l.b16 %v488
      %v524 = vunpack.c.l.b16 %v489
      %v525 = vunpack.c.l.b16 %v490
      %v526 = vunpack.c.l.b16 %v491
      %v527 = vunpack.c.l.b16 %v492
      %v528 = vunpack.c.l.b16 %v493
      %v529 = vunpack.c.l.b16 %v494
      %v530 = vpack.c.b16 %v515, %v514
      %v531 = vpack.c.b16 %v517, %v516
      %v532 = vpack.c.b16 %v519, %v518
      %v533 = vpack.c.b16 %v521, %v520
      %v534 = vpack.c.b16 %v523, %v522
      %v535 = vpack.c.b16 %v525, %v524
      %v536 = vpack.c.b16 %v527, %v526
      %v537 = vpack.c.b16 %v529, %v528
      %v540 = vunpack.c.l.b16 %v496
      %v541 = vunpack.c.l.b16 %v497
      %v542 = vpack.c.b16 %v541, %v540
      %v544 = vsel %vm240, %v530, 0
      %v547 = vsel %vm240, %v531, 0
      %v550 = vsel %vm240, %v532, 0
      %v553 = vsel %vm240, %v533, 0
      %v556 = vsel %vm240, %v534, 0
      %v559 = vsel %vm240, %v535, 0
      %v562 = vsel %vm240, %v536, 0
      %v565 = vsel %vm240, %v537, 0
      %v568 = vsel %vm265, %v542, 0
      %570 = vmatprep.subr.bf16.mxu0 0
      %571 = vmatpush1.bf16.msra.mxu0 0
      %572 = vmatprep.subr.bf16.mxu0 0
      %573 = vmatpush1.bf16.msra.mxu0 0
      %574 = vmatprep.subr.bf16.mxu0 0
      %575 = vmatpush1.bf16.msra.mxu0 0
      %576 = vmatprep.subr.bf16.mxu0 0
      %577 = vmatpush1.bf16.msra.mxu0 0
      %578 = vmatprep.subr.bf16.mxu0 0
      %579 = vmatpush1.bf16.msra.mxu0 0
      %580 = vmatprep.subr.bf16.mxu0 0
      %581 = vmatpush1.bf16.msra.mxu0 0
      %582 = vmatprep.subr.bf16.mxu0 0
      %583 = vmatpush1.bf16.msra.mxu0 0
      %584 = vmatprep.subr.bf16.mxu0 0
      %585 = vmatpush1.bf16.msra.mxu0 %v568
      %586 = vmatprep.subr.bf16.mxu0 0
      %587 = vmatpush2.bf16.msra.mxu0 0
      %588 = vmatprep.subr.bf16.mxu0 0
      %589 = vmatpush2.bf16.msra.mxu0 0
      %590 = vmatprep.subr.bf16.mxu0 0
      %591 = vmatpush2.bf16.msra.mxu0 0
      %592 = vmatprep.subr.bf16.mxu0 0
      %593 = vmatpush2.bf16.msra.mxu0 0
      %594 = vmatprep.subr.bf16.mxu0 0
      %595 = vmatpush2.bf16.msra.mxu0 0
      %596 = vmatprep.subr.bf16.mxu0 0
      %597 = vmatpush2.bf16.msra.mxu0 0
      %598 = vmatprep.subr.bf16.mxu0 0
      %599 = vmatpush2.bf16.msra.mxu0 0
      %600 = vmatprep.subr.bf16.mxu0 0
      %601 = vmatpush2.bf16.msra.mxu0 0
      %602 = vmatprep.mubr.bf16.mxu0 0
      %603 = vmatmul.mubr.bf16.gmra.mxu0 %v544
      %v604 = vpop.f32.mrf.mxu0
      %v605 = vadd.f32 0.0, %v604
      %v606 = vpop.f32.mrf.mxu0
      %v607 = vpop.f32.mrf.mxu0
      %v608 = vadd.f32 0.0, %v607
      %v609 = vpop.f32.mrf.mxu0
      %610 = vmatprep.mubr.bf16.mxu0 0
      %611 = vmatmul.mubr.bf16.gmra.mxu0 %v547
      %v612 = vpop.f32.mrf.mxu0
      %v613 = vadd.f32 0.0, %v612
      %v614 = vpop.f32.mrf.mxu0
      %v615 = vpop.f32.mrf.mxu0
      %v616 = vadd.f32 0.0, %v615
      %v617 = vpop.f32.mrf.mxu0
      %618 = vmatprep.mubr.bf16.mxu0 0
      %619 = vmatmul.mubr.bf16.gmra.mxu0 %v550
      %v620 = vpop.f32.mrf.mxu0
      %v621 = vadd.f32 0.0, %v620
      %v622 = vpop.f32.mrf.mxu0
      %v623 = vpop.f32.mrf.mxu0
      %v624 = vadd.f32 0.0, %v623
      %v625 = vpop.f32.mrf.mxu0
      %626 = vmatprep.mubr.bf16.mxu0 0
      %627 = vmatmul.mubr.bf16.gmra.mxu0 %v553
      %v628 = vpop.f32.mrf.mxu0
      %v629 = vadd.f32 0.0, %v628
      %v630 = vpop.f32.mrf.mxu0
      %v631 = vpop.f32.mrf.mxu0
      %v632 = vadd.f32 0.0, %v631
      %v633 = vpop.f32.mrf.mxu0
      %634 = vmatprep.mubr.bf16.mxu0 0
      %635 = vmatmul.mubr.bf16.gmra.mxu0 %v556
      %v636 = vpop.f32.mrf.mxu0
      %v637 = vadd.f32 0.0, %v636
      %v638 = vpop.f32.mrf.mxu0
      %v639 = vpop.f32.mrf.mxu0
      %v640 = vadd.f32 0.0, %v639
      %v641 = vpop.f32.mrf.mxu0
      %642 = vmatprep.mubr.bf16.mxu0 0
      %643 = vmatmul.mubr.bf16.gmra.mxu0 %v559
      %v644 = vpop.f32.mrf.mxu0
      %v645 = vadd.f32 0.0, %v644
      %v646 = vpop.f32.mrf.mxu0
      %v647 = vpop.f32.mrf.mxu0
      %v648 = vadd.f32 0.0, %v647
      %v649 = vpop.f32.mrf.mxu0
      %650 = vmatprep.mubr.bf16.mxu0 0
      %651 = vmatmul.mubr.bf16.gmra.mxu0 %v562
      %v652 = vpop.f32.mrf.mxu0
      %v653 = vadd.f32 0.0, %v652
      %v654 = vpop.f32.mrf.mxu0
      %v655 = vpop.f32.mrf.mxu0
      %v656 = vadd.f32 0.0, %v655
      %v657 = vpop.f32.mrf.mxu0
      %658 = vmatprep.mubr.bf16.mxu0 0
      %659 = vmatmul.mubr.bf16.gmra.mxu0 %v565
      %v660 = vpop.f32.mrf.mxu0
      %v661 = vadd.f32 0.0, %v660
      %v662 = vpop.f32.mrf.mxu0
      %v663 = vpop.f32.mrf.mxu0
      %v664 = vadd.f32 0.0, %v663
      %v665 = vpop.f32.mrf.mxu0
      %666 = vdwg.mxu0
      %v667 = vadd.f32 %v417, %v605
      %v668 = vadd.f32 %v420, %v608
      %v669 = vadd.f32 %v425, %v613
      %v670 = vadd.f32 %v428, %v616
      %v671 = vadd.f32 %v433, %v621
      %v672 = vadd.f32 %v436, %v624
      %v673 = vadd.f32 %v441, %v629
      %v674 = vadd.f32 %v444, %v632
      %v675 = vadd.f32 %v449, %v637
      %v676 = vadd.f32 %v452, %v640
      %v677 = vadd.f32 %v457, %v645
      %v678 = vadd.f32 %v460, %v648
      %v679 = vadd.f32 %v465, %v653
      %v680 = vadd.f32 %v468, %v656
      %v681 = vadd.f32 %v473, %v661
      %v682 = vadd.f32 %v476, %v664
      %v683 = vld [vmem:[%s2] sm:$0x1]
      %v685 = vlaneseq
      %v686 = vshrl.u32 %v685, 7
      %v687 = vsub.s32 0, %v686
      %v688 = vrot.slane %v683, %v687
      %v690 = vadd.f32 %v667, %v688
      %v691 = vadd.f32 %v668, %v688
      %v692 = vadd.f32 %v669, %v688
      %v693 = vadd.f32 %v670, %v688
      %v694 = vadd.f32 %v671, %v688
      %v695 = vadd.f32 %v672, %v688
      %v696 = vadd.f32 %v673, %v688
      %v697 = vadd.f32 %v674, %v688
      %v698 = vadd.f32 %v675, %v688
      %v699 = vadd.f32 %v676, %v688
      %v700 = vadd.f32 %v677, %v688
      %v701 = vadd.f32 %v678, %v688
      %v702 = vadd.f32 %v679, %v688
      %v703 = vadd.f32 %v680, %v688
      %v704 = vadd.f32 %v681, %v688
      %v705 = vadd.f32 %v682, %v688
      %v706 = vmax.f32 %v690, 0.0
      %v707 = vmax.f32 %v691, 0.0
      %v708 = vmax.f32 %v692, 0.0
      %v709 = vmax.f32 %v693, 0.0
      %v710 = vmax.f32 %v694, 0.0
      %v711 = vmax.f32 %v695, 0.0
      %v712 = vmax.f32 %v696, 0.0
      %v713 = vmax.f32 %v697, 0.0
      %v714 = vmax.f32 %v698, 0.0
      %v715 = vmax.f32 %v699, 0.0
      %v716 = vmax.f32 %v700, 0.0
      %v717 = vmax.f32 %v701, 0.0
      %v718 = vmax.f32 %v702, 0.0
      %v719 = vmax.f32 %v703, 0.0
      %v720 = vmax.f32 %v704, 0.0
      %v721 = vmax.f32 %v705, 0.0
      %v722 = vpack.c.bf16 %v707, %v706
      %v723 = vpack.c.bf16 %v709, %v708
      %v724 = vpack.c.bf16 %v711, %v710
      %v725 = vpack.c.bf16 %v713, %v712
      %v726 = vpack.c.bf16 %v715, %v714
      %v727 = vpack.c.bf16 %v717, %v716
      %v728 = vpack.c.bf16 %v719, %v718
      %v729 = vpack.c.bf16 %v721, %v720
      %v738 = vunpack.c.l.b16 %v722
      %v739 = vunpack.c.h.b16 %v722
      %v740 = vunpack.c.l.b16 %v723
      %v741 = vunpack.c.h.b16 %v723
      %v742 = vunpack.c.l.b16 %v724
      %v743 = vunpack.c.h.b16 %v724
      %v744 = vunpack.c.l.b16 %v725
      %v745 = vunpack.c.h.b16 %v725
      %v746 = vunpack.c.l.b16 %v726
      %v747 = vunpack.c.h.b16 %v726
      %v748 = vunpack.c.l.b16 %v727
      %v749 = vunpack.c.h.b16 %v727
      %v750 = vunpack.c.l.b16 %v728
      %v751 = vunpack.c.h.b16 %v728
      %v752 = vunpack.c.l.b16 %v729
      %v753 = vunpack.c.h.b16 %v729
      %v754 = vpack.c.b16 %v738, %v738
      %v755 = vpack.c.b16 %v739, %v739
      %v756 = vpack.c.b16 %v740, %v740
      %v757 = vpack.c.b16 %v741, %v741
      %v758 = vpack.c.b16 %v742, %v742
      %v759 = vpack.c.b16 %v743, %v743
      %v760 = vpack.c.b16 %v744, %v744
      %v761 = vpack.c.b16 %v745, %v745
      %v762 = vpack.c.b16 %v746, %v746
      %v763 = vpack.c.b16 %v747, %v747
      %v764 = vpack.c.b16 %v748, %v748
      %v765 = vpack.c.b16 %v749, %v749
      %v766 = vpack.c.b16 %v750, %v750
      %v767 = vpack.c.b16 %v751, %v751
      %v768 = vpack.c.b16 %v752, %v752
      %v769 = vpack.c.b16 %v753, %v753
      %vm786 = vcmask 60416
      %787 = vst.msk [vmem:[%s170] sm:$0xf] %vm786, %v754
      %788 = vst.msk [vmem:[%s170 + $0x4] sm:$0xf] %vm786, %v755
      %789 = vst.msk [vmem:[%s170 + $0x8] sm:$0xf] %vm786, %v756
      %790 = vst.msk [vmem:[%s170 + $0xc] sm:$0xf] %vm786, %v757
      %791 = vst.msk [vmem:[%s170 + $0x10] sm:$0xf] %vm786, %v758
      %792 = vst.msk [vmem:[%s170 + $0x14] sm:$0xf] %vm786, %v759
      %793 = vst.msk [vmem:[%s170 + $0x18] sm:$0xf] %vm786, %v760
      %794 = vst.msk [vmem:[%s170 + $0x1c] sm:$0xf] %vm786, %v761
      %795 = vst.msk [vmem:[%s170 + $0x20] sm:$0xf] %vm786, %v762
      %796 = vst.msk [vmem:[%s170 + $0x24] sm:$0xf] %vm786, %v763
      %797 = vst.msk [vmem:[%s170 + $0x28] sm:$0xf] %vm786, %v764
      %798 = vst.msk [vmem:[%s170 + $0x2c] sm:$0xf] %vm786, %v765
      %799 = vst.msk [vmem:[%s170 + $0x30] sm:$0xf] %vm786, %v766
      %800 = vst.msk [vmem:[%s170 + $0x34] sm:$0xf] %vm786, %v767
      %801 = vst.msk [vmem:[%s170 + $0x38] sm:$0xf] %vm786, %v768
      %802 = vst.msk [vmem:[%s170 + $0x3c] sm:$0xf] %vm786, %v769
      %p803 = scmp.lt.s32.totalorder %s14, 3
      %s804 = scalar_select %p803, %s14, 3
      %s805 = smul.addr %s804, 16
      %s806 = smul.addr %s805, 4
      %s807 = scalar_lea.vmem %s3, %s806
      // Predicated region
      $region33: #{tpu_custom_call.1} parent=31 // pred_check
        %p808 = pneg %p100
      $region34: #{tpu_custom_call.1} parent=31 // pred_check_branch
        %810 = sbr.rel (%p808) target = $region36
      $region35: #{tpu_custom_call.1} parent=31 // pred_region
        _
      $region36: #{tpu_custom_call.1} parent=31 // pred_fallthru
        _
    $region32: #{tpu_custom_call.1} parent=5 // pred_fallthru
      _
    %p811 = scmp.le.s32.totalorder 2, %s9
    // Predicated region
    $region37: #{tpu_custom_call.1} parent=5 // pred_check
      %p812 = pneg %p811
    $region38: #{tpu_custom_call.1} parent=5 // pred_check_branch
      %814 = sbr.rel (%p812) target = $region40
    $region39: #{tpu_custom_call.1} parent=5 // pred_region
      %s815 = ssub.s32 %s9, 2
      // Predicated region
      $region41: #{tpu_custom_call.1} parent=39 // pred_check
        %p816 = pneg %p106
      $region42: #{tpu_custom_call.1} parent=39 // pred_check_branch
        %818 = sbr.rel (%p816) target = $region44
      $region43: #{tpu_custom_call.1} parent=39 // pred_region
        %p819 = scmp.lt.s32.totalorder %s15, 3
        %s820 = scalar_select %p819, %s15, 3
        %s821 = smul.addr %s820, 16
        %s822 = smul.addr %s821, 4
        %s823 = scalar_lea.vmem %s3, %s822
      $region44: #{tpu_custom_call.1} parent=39 // pred_fallthru
        _
    $region40: #{tpu_custom_call.1} parent=5 // pred_fallthru
      _
  $region6: #{tpu_custom_call.1} parent=0 // loop_footer
    %s13 = sadd.s32 1, %s9
  $region7: #{tpu_custom_call.1} parent=0 // loop_footer_branch
    %8 = sbr.rel target = $region3
  $region8: #{tpu_custom_call.1} parent=0 // loop_exit
    _

// kernel: tpu_custom_call.1
$region0: #{tpu_custom_call.1}
  #allocation0 [shape = 'u32[]', space=smem, size = 0x4, offset = 0x4, fixed_abs, tag = 'smem constant byte address 0x4 - core index']
  #allocation1 [shape = 'u32[144,128]{1,0:T(1,128)}', space=vmem, size = 0x12000, scoped, tag = 'internal scratch']
  %s0 = inlined_call_operand.vmem [shape: bf16[4,160,12], index: 0, kind: input, shape index: {}]
  %s1 = inlined_call_operand.vmem [shape: bf16[3,12,8], index: 1, kind: input, shape index: {}]
  %s2 = inlined_call_operand.vmem [shape: f32[1,8], index: 2, kind: input, shape index: {}]
  %s3 = inlined_call_operand.vmem [shape: bf16[4,128,8], index: 3, kind: output, shape index: {}]
  %s4 = sld [smem:[#allocation0]]
  $region45: #{tpu_custom_call.1} parent=0
    _
  %s6 = ssub.s32 1, %s4
  %s7 = scalar_select 0, %s6, %s4
  loop: start=0, step=1, limit=6
  $region2: #{tpu_custom_call.1} parent=0 // loop_pre_header
    _
  $region3: #{tpu_custom_call.1} parent=0 // loop_header
    %s9 = sphi 0, %s13
    %p10 = scmp.ge.s32.totalorder %s9, 6
    %s19 = sphi 0, %s21
    %s22 = sphi 0, %s19
    %s23 = sphi 0, %s22
    %s39 = sphi 0, %s23
    %s43 = sphi 0, %s43
    %s45 = sphi 0, %s43
    %s46 = sphi 0, %s45
    %s60 = sphi 0, %s46
    %s64 = sphi 0, %s64
    %s66 = sphi 0, %s64
    %s67 = sphi 0, %s66
    %s81 = sphi 0, %s67
    %s87 = sphi 0, %s89
    %s90 = sphi 0, %s87
    %s91 = sphi 0, %s90
    %s107 = sphi 0, %s91
  $region4: #{tpu_custom_call.1} parent=0 // loop_header_branch
    %12 = sbr.rel (%p10) target = $region8
  $region5: #{tpu_custom_call.1} parent=0 // loop_body
    %s14 = ssub.s32 %s9, 1
    %s15 = ssub.s32 %s9, 2
    %s16 = sadd.s32 %s9, 1
    %s17 = ssub.s32 %s9, %s16
    %p18 = scmp.eq.s32.totalorder %s17, 0
    %s20 = sadd.s32 %s19, 1
    %s21 = scalar_select %p18, %s19, %s20
    %p24 = pneg %p18
    %p25 = scmp.eq.s32.totalorder %s9, 3
    %p26 = por %p24, %p25
    %p27 = scmp.ne.s32.totalorder %s19, %s22
    %p28 = scmp.eq.s32.totalorder %s9, 0
    %p29 = por %p27, %p28
    %p30 = scmp.ne.s32.totalorder %s19, %s22
    %p31 = scmp.eq.s32.totalorder %s14, 3
    %p32 = por %p30, %p31
    %p33 = scmp.ne.s32.totalorder %s22, %s23
    %p34 = scmp.eq.s32.totalorder %s14, 0
    %p35 = por %p33, %p34
    %p36 = scmp.ne.s32.totalorder %s22, %s23
    %p37 = scmp.eq.s32.totalorder %s15, 3
    %p38 = por %p36, %p37
    %p40 = scmp.ne.s32.totalorder %s23, %s39
    %p41 = scmp.eq.s32.totalorder %s15, 0
    %p42 = por %p40, %p41
    %s44 = sadd.s32 %s43, 1
    %p47 = scmp.eq.s32.totalorder %s9, 3
    %p48 = scmp.ne.s32.totalorder %s43, %s45
    %p49 = scmp.eq.s32.totalorder %s9, 0
    %p50 = por %p48, %p49
    %p51 = scmp.ne.s32.totalorder %s43, %s45
    %p52 = scmp.eq.s32.totalorder %s14, 3
    %p53 = por %p51, %p52
    %p54 = scmp.ne.s32.totalorder %s45, %s46
    %p55 = scmp.eq.s32.totalorder %s14, 0
    %p56 = por %p54, %p55
    %p57 = scmp.ne.s32.totalorder %s45, %s46
    %p58 = scmp.eq.s32.totalorder %s15, 3
    %p59 = por %p57, %p58
    %p61 = scmp.ne.s32.totalorder %s46, %s60
    %p62 = scmp.eq.s32.totalorder %s15, 0
    %p63 = por %p61, %p62
    %s65 = sadd.s32 %s64, 1
    %p68 = scmp.eq.s32.totalorder %s9, 3
    %p69 = scmp.ne.s32.totalorder %s64, %s66
    %p70 = scmp.eq.s32.totalorder %s9, 0
    %p71 = por %p69, %p70
    %p72 = scmp.ne.s32.totalorder %s64, %s66
    %p73 = scmp.eq.s32.totalorder %s14, 3
    %p74 = por %p72, %p73
    %p75 = scmp.ne.s32.totalorder %s66, %s67
    %p76 = scmp.eq.s32.totalorder %s14, 0
    %p77 = por %p75, %p76
    %p78 = scmp.ne.s32.totalorder %s66, %s67
    %p79 = scmp.eq.s32.totalorder %s15, 3
    %p80 = por %p78, %p79
    %p82 = scmp.ne.s32.totalorder %s67, %s81
    %p83 = scmp.eq.s32.totalorder %s15, 0
    %p84 = por %p82, %p83
    %s85 = ssub.s32 %s9, %s16
    %p86 = scmp.eq.s32.totalorder %s85, 0
    %s88 = sadd.s32 %s87, 1
    %s89 = scalar_select %p86, %s87, %s88
    %p92 = pneg %p86
    %p93 = scmp.eq.s32.totalorder %s9, 3
    %p94 = por %p92, %p93
    %p95 = scmp.ne.s32.totalorder %s87, %s90
    %p96 = scmp.eq.s32.totalorder %s9, 0
    %p97 = por %p95, %p96
    %p98 = scmp.ne.s32.totalorder %s87, %s90
    %p99 = scmp.eq.s32.totalorder %s14, 3
    %p100 = por %p98, %p99
    %p101 = scmp.ne.s32.totalorder %s90, %s91
    %p102 = scmp.eq.s32.totalorder %s14, 0
    %p103 = por %p101, %p102
    %p104 = scmp.ne.s32.totalorder %s90, %s91
    %p105 = scmp.eq.s32.totalorder %s15, 3
    %p106 = por %p104, %p105
    %p108 = scmp.ne.s32.totalorder %s91, %s107
    %p109 = scmp.eq.s32.totalorder %s15, 0
    %p110 = por %p108, %p109
    %p111 = scmp.le.s32.totalorder 1, %s9
    %p112 = scmp.lt.s32.totalorder %s9, 5
    %p113 = pnand %p111, %p112
    %p114 = pneg %p113
    // Predicated region
    $region9: #{tpu_custom_call.1} parent=5 // pred_check
      _
    $region10: #{tpu_custom_call.1} parent=5 // pred_check_branch
      %116 = sbr.rel (%p113) target = $region12
    $region11: #{tpu_custom_call.1} parent=5 // pred_region
      %s117 = ssub.s32 %s9, 1
      // Predicated region
      $region13: #{tpu_custom_call.1} parent=11 // pred_check
        %p118 = pneg %p56
      $region14: #{tpu_custom_call.1} parent=11 // pred_check_branch
        %120 = sbr.rel (%p118) target = $region16
      $region15: #{tpu_custom_call.1} parent=11 // pred_region
        _
      $region16: #{tpu_custom_call.1} parent=11 // pred_fallthru
        _
      // Predicated region
      $region17: #{tpu_custom_call.1} parent=11 // pred_check
        %p121 = pneg %p77
      $region18: #{tpu_custom_call.1} parent=11 // pred_check_branch
        %123 = sbr.rel (%p121) target = $region20
      $region19: #{tpu_custom_call.1} parent=11 // pred_region
        _
      $region20: #{tpu_custom_call.1} parent=11 // pred_fallthru
        _
    $region12: #{tpu_custom_call.1} parent=5 // pred_fallthru
      _
    %p124 = scmp.lt.s32.totalorder %s9, 4
    // Predicated region
    $region21: #{tpu_custom_call.1} parent=5 // pred_check
      %p125 = pneg %p124
    $region22: #{tpu_custom_call.1} parent=5 // pred_check_branch
      %127 = sbr.rel (%p125) target = $region24
    $region23: #{tpu_custom_call.1} parent=5 // pred_region
      // Predicated region
      $region25: #{tpu_custom_call.1} parent=23 // pred_check
        %p128 = pneg %p29
      $region26: #{tpu_custom_call.1} parent=23 // pred_check_branch
        %130 = sbr.rel (%p128) target = $region28
      $region27: #{tpu_custom_call.1} parent=23 // pred_region
        %p131 = scmp.lt.s32.totalorder %s9, 3
        %s132 = scalar_select %p131, %s9, 3
        %s133 = smul.addr %s132, 20
        %s134 = smul.addr %s133, 4
        %s135 = scalar_lea.vmem %s0, %s134
      $region28: #{tpu_custom_call.1} parent=23 // pred_fallthru
        _
    $region24: #{tpu_custom_call.1} parent=5 // pred_fallthru
      _
    %p136 = scmp.le.s32.totalorder 1, %s9
    %p137 = scmp.lt.s32.totalorder %s9, 5
    %p138 = pnand %p136, %p137
    %p139 = pneg %p138
    // Predicated region
    $region29: #{tpu_custom_call.1} parent=5 // pred_check
      _
    $region30: #{tpu_custom_call.1} parent=5 // pred_check_branch
      %141 = sbr.rel (%p138) target = $region32
    $region31: #{tpu_custom_call.1} parent=5 // pred_region
      %s142 = ssub.s32 %s9, 1
      %p143 = scmp.lt.s32.totalorder %s14, 3
      %s144 = scalar_select %p143, %s14, 3
      %s145 = smul.addr %s144, 20
      %s146 = smul.addr %s145, 4
      %s147 = scalar_lea.vmem %s0, %s146
      %p148 = pneg %p35
      %p149 = pneg %p32
      %p150 = pneg %p56
      %p151 = pneg %p53
      %p152 = pneg %p77
      %p153 = pneg %p74
      %p154 = pneg %p103
      %p155 = pneg %p100
      %p156 = scmp.lt.s32.totalorder %s14, 3
      %s157 = scalar_select %p156, %s14, 3
      %s158 = smul.addr %s157, 16
      %s159 = smul.addr %s158, 4
      %s160 = scalar_lea.vmem %s3, %s159
      %p161 = scmp.lt.s32.totalorder %s14, 3
      %s162 = scalar_select %p161, %s14, 3
      %s163 = smul.addr %s162, 20
      %s164 = smul.addr %s163, 4
      %s165 = scalar_lea.vmem %s0, %s164
      %p166 = scmp.lt.s32.totalorder %s14, 3
      %s167 = scalar_select %p166, %s14, 3
      %s168 = smul.addr %s167, 16
      %s169 = smul.addr %s168, 4
      %s170 = scalar_lea.vmem %s3, %s169
      %v172 = vld [vmem:[%s165] sm:$0xf]
      %v173 = vld [vmem:[%s165 + $0x4] sm:$0xf]
      %v174 = vld [vmem:[%s165 + $0x8] sm:$0xf]
      %v175 = vld [vmem:[%s165 + $0xc] sm:$0xf]
      %v176 = vld [vmem:[%s165 + $0x10] sm:$0xf]
      %v177 = vld [vmem:[%s165 + $0x14] sm:$0xf]
      %v178 = vld [vmem:[%s165 + $0x18] sm:$0xf]
      %v179 = vld [vmem:[%s165 + $0x1c] sm:$0xf]
      %v180 = vld [vmem:[%s165 + $0x20] sm:$0xf]
      %v181 = vld [vmem:[%s165 + $0x24] sm:$0xf]
      %v182 = vld [vmem:[%s165 + $0x28] sm:$0xf]
      %v183 = vld [vmem:[%s165 + $0x2c] sm:$0xf]
      %v184 = vld [vmem:[%s165 + $0x30] sm:$0xf]
      %v185 = vld [vmem:[%s165 + $0x34] sm:$0xf]
      %v186 = vld [vmem:[%s165 + $0x38] sm:$0xf]
      %v187 = vld [vmem:[%s165 + $0x3c] sm:$0xf]
      %v188 = vld [vmem:[%s1] sm:$0xf]
      %v189 = vld [vmem:[%s1 + $0x4] sm:$0x3]
      %v190 = vld [vmem:[%s165 + $0x40] sm:$0xf]
      %v191 = vld [vmem:[%s165 + $0x44] sm:$0xf]
      %s192 = scalar_lea.vmem %s1, 8
      %v193 = vld [vmem:[%s192] sm:$0xf]
      %v194 = vld [vmem:[%s192 + $0x4] sm:$0x3]
      %v211 = vunpack.c.l.b16 %v174
      %v212 = vunpack.c.l.b16 %v175
      %v213 = vunpack.c.l.b16 %v176
      %v214 = vunpack.c.l.b16 %v177
      %v215 = vunpack.c.l.b16 %v178
      %v216 = vunpack.c.l.b16 %v179
      %v217 = vunpack.c.l.b16 %v180
      %v218 = vunpack.c.l.b16 %v181
      %v219 = vunpack.c.l.b16 %v182
      %v220 = vunpack.c.l.b16 %v183
      %v221 = vunpack.c.l.b16 %v184
      %v222 = vunpack.c.l.b16 %v185
      %v223 = vunpack.c.l.b16 %v186
      %v224 = vunpack.c.l.b16 %v187
      %v225 = vunpack.c.l.b16 %v190
      %v226 = vunpack.c.l.b16 %v191
      %v227 = vpack.c.b16 %v212, %v211
      %v228 = vpack.c.b16 %v214, %v213
      %v229 = vpack.c.b16 %v216, %v215
      %v230 = vpack.c.b16 %v218, %v217
      %v231 = vpack.c.b16 %v220, %v219
      %v232 = vpack.c.b16 %v222, %v221
      %v233 = vpack.c.b16 %v224, %v223
      %v234 = vpack.c.b16 %v226, %v225
      %v237 = vunpack.c.l.b16 %v193
      %v238 = vunpack.c.l.b16 %v194
      %v239 = vpack.c.b16 %v238, %v237
      %vm240 = vcmask 97280
      %v242 = vsel %vm240, %v227, 0
      %v245 = vsel %vm240, %v228, 0
      %v248 = vsel %vm240, %v229, 0
      %v251 = vsel %vm240, %v230, 0
      %v254 = vsel %vm240, %v231, 0
      %v257 = vsel %vm240, %v232, 0
      %v260 = vsel %vm240, %v233, 0
      %v263 = vsel %vm240, %v234, 0
      %vm265 = vcmask 1045504
      %v267 = vsel %vm265, %v239, 0
      %269 = vmatprep.subr.bf16.mxu0 0
      %270 = vmatpush1.bf16.msra.mxu0 0
      %271 = vmatprep.subr.bf16.mxu0 0
      %272 = vmatpush1.bf16.msra.mxu0 0
      %273 = vmatprep.subr.bf16.mxu0 0
      %274 = vmatpush1.bf16.msra.mxu0 0
      %275 = vmatprep.subr.bf16.mxu0 0
      %276 = vmatpush1.bf16.msra.mxu0 0
      %277 = vmatprep.subr.bf16.mxu0 0
      %278 = vmatpush1.bf16.msra.mxu0 0
      %279 = vmatprep.subr.bf16.mxu0 0
      %280 = vmatpush1.bf16.msra.mxu0 0
      %281 = vmatprep.subr.bf16.mxu0 0
      %282 = vmatpush1.bf16.msra.mxu0 0
      %283 = vmatprep.subr.bf16.mxu0 0
      %284 = vmatpush1.bf16.msra.mxu0 %v267
      %285 = vmatprep.subr.bf16.mxu0 0
      %286 = vmatpush2.bf16.msra.mxu0 0
      %287 = vmatprep.subr.bf16.mxu0 0
      %288 = vmatpush2.bf16.msra.mxu0 0
      %289 = vmatprep.subr.bf16.mxu0 0
      %290 = vmatpush2.bf16.msra.mxu0 0
      %291 = vmatprep.subr.bf16.mxu0 0
      %292 = vmatpush2.bf16.msra.mxu0 0
      %293 = vmatprep.subr.bf16.mxu0 0
      %294 = vmatpush2.bf16.msra.mxu0 0
      %295 = vmatprep.subr.bf16.mxu0 0
      %296 = vmatpush2.bf16.msra.mxu0 0
      %297 = vmatprep.subr.bf16.mxu0 0
      %298 = vmatpush2.bf16.msra.mxu0 0
      %299 = vmatprep.subr.bf16.mxu0 0
      %300 = vmatpush2.bf16.msra.mxu0 0
      %301 = vmatprep.mubr.bf16.mxu0 0
      %302 = vmatmul.mubr.bf16.gmra.mxu0 %v242
      %v303 = vpop.f32.mrf.mxu0
      %v304 = vadd.f32 0.0, %v303
      %v305 = vpop.f32.mrf.mxu0
      %v306 = vpop.f32.mrf.mxu0
      %v307 = vadd.f32 0.0, %v306
      %v308 = vpop.f32.mrf.mxu0
      %309 = vmatprep.mubr.bf16.mxu0 0
      %310 = vmatmul.mubr.bf16.gmra.mxu0 %v245
      %v311 = vpop.f32.mrf.mxu0
      %v312 = vadd.f32 0.0, %v311
      %v313 = vpop.f32.mrf.mxu0
      %v314 = vpop.f32.mrf.mxu0
      %v315 = vadd.f32 0.0, %v314
      %v316 = vpop.f32.mrf.mxu0
      %317 = vmatprep.mubr.bf16.mxu0 0
      %318 = vmatmul.mubr.bf16.gmra.mxu0 %v248
      %v319 = vpop.f32.mrf.mxu0
      %v320 = vadd.f32 0.0, %v319
      %v321 = vpop.f32.mrf.mxu0
      %v322 = vpop.f32.mrf.mxu0
      %v323 = vadd.f32 0.0, %v322
      %v324 = vpop.f32.mrf.mxu0
      %325 = vmatprep.mubr.bf16.mxu0 0
      %326 = vmatmul.mubr.bf16.gmra.mxu0 %v251
      %v327 = vpop.f32.mrf.mxu0
      %v328 = vadd.f32 0.0, %v327
      %v329 = vpop.f32.mrf.mxu0
      %v330 = vpop.f32.mrf.mxu0
      %v331 = vadd.f32 0.0, %v330
      %v332 = vpop.f32.mrf.mxu0
      %333 = vmatprep.mubr.bf16.mxu0 0
      %334 = vmatmul.mubr.bf16.gmra.mxu0 %v254
      %v335 = vpop.f32.mrf.mxu0
      %v336 = vadd.f32 0.0, %v335
      %v337 = vpop.f32.mrf.mxu0
      %v338 = vpop.f32.mrf.mxu0
      %v339 = vadd.f32 0.0, %v338
      %v340 = vpop.f32.mrf.mxu0
      %341 = vmatprep.mubr.bf16.mxu0 0
      %342 = vmatmul.mubr.bf16.gmra.mxu0 %v257
      %v343 = vpop.f32.mrf.mxu0
      %v344 = vadd.f32 0.0, %v343
      %v345 = vpop.f32.mrf.mxu0
      %v346 = vpop.f32.mrf.mxu0
      %v347 = vadd.f32 0.0, %v346
      %v348 = vpop.f32.mrf.mxu0
      %349 = vmatprep.mubr.bf16.mxu0 0
      %350 = vmatmul.mubr.bf16.gmra.mxu0 %v260
      %v351 = vpop.f32.mrf.mxu0
      %v352 = vadd.f32 0.0, %v351
      %v353 = vpop.f32.mrf.mxu0
      %v354 = vpop.f32.mrf.mxu0
      %v355 = vadd.f32 0.0, %v354
      %v356 = vpop.f32.mrf.mxu0
      %357 = vmatprep.mubr.bf16.mxu0 0
      %358 = vmatmul.mubr.bf16.gmra.mxu0 %v263
      %v359 = vpop.f32.mrf.mxu0
      %v360 = vadd.f32 0.0, %v359
      %v361 = vpop.f32.mrf.mxu0
      %v362 = vpop.f32.mrf.mxu0
      %v363 = vadd.f32 0.0, %v362
      %v364 = vpop.f32.mrf.mxu0
      %365 = vdwg.mxu0
      %v368 = vunpack.c.l.b16 %v172
      %v369 = vunpack.c.l.b16 %v173
      %v370 = vpack.c.b16 %v369, %v368
      %v373 = vunpack.c.l.b16 %v188
      %v374 = vunpack.c.l.b16 %v189
      %v375 = vpack.c.b16 %v374, %v373
      %v377 = vsel %vm240, %v370, 0
      %v380 = vsel %vm265, %v375, 0
      %382 = vmatprep.subr.bf16.mxu0 0
      %383 = vmatpush1.bf16.msra.mxu0 0
      %384 = vmatprep.subr.bf16.mxu0 0
      %385 = vmatpush1.bf16.msra.mxu0 0
      %386 = vmatprep.subr.bf16.mxu0 0
      %387 = vmatpush1.bf16.msra.mxu0 0
      %388 = vmatprep.subr.bf16.mxu0 0
      %389 = vmatpush1.bf16.msra.mxu0 0
      %390 = vmatprep.subr.bf16.mxu0 0
      %391 = vmatpush1.bf16.msra.mxu0 0
      %392 = vmatprep.subr.bf16.mxu0 0
      %393 = vmatpush1.bf16.msra.mxu0 0
      %394 = vmatprep.subr.bf16.mxu0 0
      %395 = vmatpush1.bf16.msra.mxu0 0
      %396 = vmatprep.subr.bf16.mxu0 0
      %397 = vmatpush1.bf16.msra.mxu0 %v380
      %398 = vmatprep.subr.bf16.mxu0 0
      %399 = vmatpush2.bf16.msra.mxu0 0
      %400 = vmatprep.subr.bf16.mxu0 0
      %401 = vmatpush2.bf16.msra.mxu0 0
      %402 = vmatprep.subr.bf16.mxu0 0
      %403 = vmatpush2.bf16.msra.mxu0 0
      %404 = vmatprep.subr.bf16.mxu0 0
      %405 = vmatpush2.bf16.msra.mxu0 0
      %406 = vmatprep.subr.bf16.mxu0 0
      %407 = vmatpush2.bf16.msra.mxu0 0
      %408 = vmatprep.subr.bf16.mxu0 0
      %409 = vmatpush2.bf16.msra.mxu0 0
      %410 = vmatprep.subr.bf16.mxu0 0
      %411 = vmatpush2.bf16.msra.mxu0 0
      %412 = vmatprep.subr.bf16.mxu0 0
      %413 = vmatpush2.bf16.msra.mxu0 0
      %414 = vmatprep.mubr.bf16.mxu0 0
      %415 = vmatmul.mubr.bf16.gmra.mxu0 %v377
      %v416 = vpop.f32.mrf.mxu0
      %v417 = vadd.f32 %v304, %v416
      %v418 = vpop.f32.mrf.mxu0
      %v419 = vpop.f32.mrf.mxu0
      %v420 = vadd.f32 %v307, %v419
      %v421 = vpop.f32.mrf.mxu0
      %422 = vmatprep.mubr.bf16.mxu0 0
      %423 = vmatmul.mubr.bf16.gmra.mxu0 %v242
      %v424 = vpop.f32.mrf.mxu0
      %v425 = vadd.f32 %v312, %v424
      %v426 = vpop.f32.mrf.mxu0
      %v427 = vpop.f32.mrf.mxu0
      %v428 = vadd.f32 %v315, %v427
      %v429 = vpop.f32.mrf.mxu0
      %430 = vmatprep.mubr.bf16.mxu0 0
      %431 = vmatmul.mubr.bf16.gmra.mxu0 %v245
      %v432 = vpop.f32.mrf.mxu0
      %v433 = vadd.f32 %v320, %v432
      %v434 = vpop.f32.mrf.mxu0
      %v435 = vpop.f32.mrf.mxu0
      %v436 = vadd.f32 %v323, %v435
      %v437 = vpop.f32.mrf.mxu0
      %438 = vmatprep.mubr.bf16.mxu0 0
      %439 = vmatmul.mubr.bf16.gmra.mxu0 %v248
      %v440 = vpop.f32.mrf.mxu0
      %v441 = vadd.f32 %v328, %v440
      %v442 = vpop.f32.mrf.mxu0
      %v443 = vpop.f32.mrf.mxu0
      %v444 = vadd.f32 %v331, %v443
      %v445 = vpop.f32.mrf.mxu0
      %446 = vmatprep.mubr.bf16.mxu0 0
      %447 = vmatmul.mubr.bf16.gmra.mxu0 %v251
      %v448 = vpop.f32.mrf.mxu0
      %v449 = vadd.f32 %v336, %v448
      %v450 = vpop.f32.mrf.mxu0
      %v451 = vpop.f32.mrf.mxu0
      %v452 = vadd.f32 %v339, %v451
      %v453 = vpop.f32.mrf.mxu0
      %454 = vmatprep.mubr.bf16.mxu0 0
      %455 = vmatmul.mubr.bf16.gmra.mxu0 %v254
      %v456 = vpop.f32.mrf.mxu0
      %v457 = vadd.f32 %v344, %v456
      %v458 = vpop.f32.mrf.mxu0
      %v459 = vpop.f32.mrf.mxu0
      %v460 = vadd.f32 %v347, %v459
      %v461 = vpop.f32.mrf.mxu0
      %462 = vmatprep.mubr.bf16.mxu0 0
      %463 = vmatmul.mubr.bf16.gmra.mxu0 %v257
      %v464 = vpop.f32.mrf.mxu0
      %v465 = vadd.f32 %v352, %v464
      %v466 = vpop.f32.mrf.mxu0
      %v467 = vpop.f32.mrf.mxu0
      %v468 = vadd.f32 %v355, %v467
      %v469 = vpop.f32.mrf.mxu0
      %470 = vmatprep.mubr.bf16.mxu0 0
      %471 = vmatmul.mubr.bf16.gmra.mxu0 %v260
      %v472 = vpop.f32.mrf.mxu0
      %v473 = vadd.f32 %v360, %v472
      %v474 = vpop.f32.mrf.mxu0
      %v475 = vpop.f32.mrf.mxu0
      %v476 = vadd.f32 %v363, %v475
      %v477 = vpop.f32.mrf.mxu0
      %478 = vdwg.mxu0
      %v479 = vld [vmem:[%s165 + $0x10] sm:$0xf]
      %v480 = vld [vmem:[%s165 + $0x14] sm:$0xf]
      %v481 = vld [vmem:[%s165 + $0x18] sm:$0xf]
      %v482 = vld [vmem:[%s165 + $0x1c] sm:$0xf]
      %v483 = vld [vmem:[%s165 + $0x20] sm:$0xf]
      %v484 = vld [vmem:[%s165 + $0x24] sm:$0xf]
      %v485 = vld [vmem:[%s165 + $0x28] sm:$0xf]
      %v486 = vld [vmem:[%s165 + $0x2c] sm:$0xf]
      %v487 = vld [vmem:[%s165 + $0x30] sm:$0xf]
      %v488 = vld [vmem:[%s165 + $0x34] sm:$0xf]
      %v489 = vld [vmem:[%s165 + $0x38] sm:$0xf]
      %v490 = vld [vmem:[%s165 + $0x3c] sm:$0xf]
      %v491 = vld [vmem:[%s165 + $0x40] sm:$0xf]
      %v492 = vld [vmem:[%s165 + $0x44] sm:$0xf]
      %v493 = vld [vmem:[%s165 + $0x48] sm:$0xf]
      %v494 = vld [vmem:[%s165 + $0x4c] sm:$0xf]
      %s495 = scalar_lea.vmem %s1, 16
      %v496 = vld [vmem:[%s495] sm:$0xf]
      %v497 = vld [vmem:[%s495 + $0x4] sm:$0x3]
      %v514 = vunpack.c.l.b16 %v479
      %v515 = vunpack.c.l.b16 %v480
      %v516 = vunpack.c.l.b16 %v481
      %v517 = vunpack.c.l.b16 %v482
      %v518 = vunpack.c.l.b16 %v483
      %v519 = vunpack.c.l.b16 %v484
      %v520 = vunpack.c.l.b16 %v485
      %v521 = vunpack.c.l.b16 %v486
      %v522 = vunpack.c.l.b16 %v487
      %v523 = vunpack.c.l.b16 %v488
      %v524 = vunpack.c.l.b16 %v489
      %v525 = vunpack.c.l.b16 %v490
      %v526 = vunpack.c.l.b16 %v491
      %v527 = vunpack.c.l.b16 %v492
      %v528 = vunpack.c.l.b16 %v493
      %v529 = vunpack.c.l.b16 %v494
      %v530 = vpack.c.b16 %v515, %v514
      %v531 = vpack.c.b16 %v517, %v516
      %v532 = vpack.c.b16 %v519, %v518
      %v533 = vpack.c.b16 %v521, %v520
      %v534 = vpack.c.b16 %v523, %v522
      %v535 = vpack.c.b16 %v525, %v524
      %v536 = vpack.c.b16 %v527, %v526
      %v537 = vpack.c.b16 %v529, %v528
      %v540 = vunpack.c.l.b16 %v496
      %v541 = vunpack.c.l.b16 %v497
      %v542 = vpack.c.b16 %v541, %v540
      %v544 = vsel %vm240, %v530, 0
      %v547 = vsel %vm240, %v531, 0
      %v550 = vsel %vm240, %v532, 0
      %v553 = vsel %vm240, %v533, 0
      %v556 = vsel %vm240, %v534, 0
      %v559 = vsel %vm240, %v535, 0
      %v562 = vsel %vm240, %v536, 0
      %v565 = vsel %vm240, %v537, 0
      %v568 = vsel %vm265, %v542, 0
      %570 = vmatprep.subr.bf16.mxu0 0
      %571 = vmatpush1.bf16.msra.mxu0 0
      %572 = vmatprep.subr.bf16.mxu0 0
      %573 = vmatpush1.bf16.msra.mxu0 0
      %574 = vmatprep.subr.bf16.mxu0 0
      %575 = vmatpush1.bf16.msra.mxu0 0
      %576 = vmatprep.subr.bf16.mxu0 0
      %577 = vmatpush1.bf16.msra.mxu0 0
      %578 = vmatprep.subr.bf16.mxu0 0
      %579 = vmatpush1.bf16.msra.mxu0 0
      %580 = vmatprep.subr.bf16.mxu0 0
      %581 = vmatpush1.bf16.msra.mxu0 0
      %582 = vmatprep.subr.bf16.mxu0 0
      %583 = vmatpush1.bf16.msra.mxu0 0
      %584 = vmatprep.subr.bf16.mxu0 0
      %585 = vmatpush1.bf16.msra.mxu0 %v568
      %586 = vmatprep.subr.bf16.mxu0 0
      %587 = vmatpush2.bf16.msra.mxu0 0
      %588 = vmatprep.subr.bf16.mxu0 0
      %589 = vmatpush2.bf16.msra.mxu0 0
      %590 = vmatprep.subr.bf16.mxu0 0
      %591 = vmatpush2.bf16.msra.mxu0 0
      %592 = vmatprep.subr.bf16.mxu0 0
      %593 = vmatpush2.bf16.msra.mxu0 0
      %594 = vmatprep.subr.bf16.mxu0 0
      %595 = vmatpush2.bf16.msra.mxu0 0
      %596 = vmatprep.subr.bf16.mxu0 0
      %597 = vmatpush2.bf16.msra.mxu0 0
      %598 = vmatprep.subr.bf16.mxu0 0
      %599 = vmatpush2.bf16.msra.mxu0 0
      %600 = vmatprep.subr.bf16.mxu0 0
      %601 = vmatpush2.bf16.msra.mxu0 0
      %602 = vmatprep.mubr.bf16.mxu0 0
      %603 = vmatmul.mubr.bf16.gmra.mxu0 %v544
      %v604 = vpop.f32.mrf.mxu0
      %v605 = vadd.f32 0.0, %v604
      %v606 = vpop.f32.mrf.mxu0
      %v607 = vpop.f32.mrf.mxu0
      %v608 = vadd.f32 0.0, %v607
      %v609 = vpop.f32.mrf.mxu0
      %610 = vmatprep.mubr.bf16.mxu0 0
      %611 = vmatmul.mubr.bf16.gmra.mxu0 %v547
      %v612 = vpop.f32.mrf.mxu0
      %v613 = vadd.f32 0.0, %v612
      %v614 = vpop.f32.mrf.mxu0
      %v615 = vpop.f32.mrf.mxu0
      %v616 = vadd.f32 0.0, %v615
      %v617 = vpop.f32.mrf.mxu0
      %618 = vmatprep.mubr.bf16.mxu0 0
      %619 = vmatmul.mubr.bf16.gmra.mxu0 %v550
      %v620 = vpop.f32.mrf.mxu0
      %v621 = vadd.f32 0.0, %v620
      %v622 = vpop.f32.mrf.mxu0
      %v623 = vpop.f32.mrf.mxu0
      %v624 = vadd.f32 0.0, %v623
      %v625 = vpop.f32.mrf.mxu0
      %626 = vmatprep.mubr.bf16.mxu0 0
      %627 = vmatmul.mubr.bf16.gmra.mxu0 %v553
      %v628 = vpop.f32.mrf.mxu0
      %v629 = vadd.f32 0.0, %v628
      %v630 = vpop.f32.mrf.mxu0
      %v631 = vpop.f32.mrf.mxu0
      %v632 = vadd.f32 0.0, %v631
      %v633 = vpop.f32.mrf.mxu0
      %634 = vmatprep.mubr.bf16.mxu0 0
      %635 = vmatmul.mubr.bf16.gmra.mxu0 %v556
      %v636 = vpop.f32.mrf.mxu0
      %v637 = vadd.f32 0.0, %v636
      %v638 = vpop.f32.mrf.mxu0
      %v639 = vpop.f32.mrf.mxu0
      %v640 = vadd.f32 0.0, %v639
      %v641 = vpop.f32.mrf.mxu0
      %642 = vmatprep.mubr.bf16.mxu0 0
      %643 = vmatmul.mubr.bf16.gmra.mxu0 %v559
      %v644 = vpop.f32.mrf.mxu0
      %v645 = vadd.f32 0.0, %v644
      %v646 = vpop.f32.mrf.mxu0
      %v647 = vpop.f32.mrf.mxu0
      %v648 = vadd.f32 0.0, %v647
      %v649 = vpop.f32.mrf.mxu0
      %650 = vmatprep.mubr.bf16.mxu0 0
      %651 = vmatmul.mubr.bf16.gmra.mxu0 %v562
      %v652 = vpop.f32.mrf.mxu0
      %v653 = vadd.f32 0.0, %v652
      %v654 = vpop.f32.mrf.mxu0
      %v655 = vpop.f32.mrf.mxu0
      %v656 = vadd.f32 0.0, %v655
      %v657 = vpop.f32.mrf.mxu0
      %658 = vmatprep.mubr.bf16.mxu0 0
      %659 = vmatmul.mubr.bf16.gmra.mxu0 %v565
      %v660 = vpop.f32.mrf.mxu0
      %v661 = vadd.f32 0.0, %v660
      %v662 = vpop.f32.mrf.mxu0
      %v663 = vpop.f32.mrf.mxu0
      %v664 = vadd.f32 0.0, %v663
      %v665 = vpop.f32.mrf.mxu0
      %666 = vdwg.mxu0
      %v667 = vadd.f32 %v417, %v605
      %v668 = vadd.f32 %v420, %v608
      %v669 = vadd.f32 %v425, %v613
      %v670 = vadd.f32 %v428, %v616
      %v671 = vadd.f32 %v433, %v621
      %v672 = vadd.f32 %v436, %v624
      %v673 = vadd.f32 %v441, %v629
      %v674 = vadd.f32 %v444, %v632
      %v675 = vadd.f32 %v449, %v637
      %v676 = vadd.f32 %v452, %v640
      %v677 = vadd.f32 %v457, %v645
      %v678 = vadd.f32 %v460, %v648
      %v679 = vadd.f32 %v465, %v653
      %v680 = vadd.f32 %v468, %v656
      %v681 = vadd.f32 %v473, %v661
      %v682 = vadd.f32 %v476, %v664
      %v683 = vld [vmem:[%s2] sm:$0x1]
      %v685 = vlaneseq
      %v686 = vshrl.u32 %v685, 7
      %v687 = vsub.s32 0, %v686
      %v688 = vrot.slane %v683, %v687
      %v690 = vadd.f32 %v667, %v688
      %v691 = vadd.f32 %v668, %v688
      %v692 = vadd.f32 %v669, %v688
      %v693 = vadd.f32 %v670, %v688
      %v694 = vadd.f32 %v671, %v688
      %v695 = vadd.f32 %v672, %v688
      %v696 = vadd.f32 %v673, %v688
      %v697 = vadd.f32 %v674, %v688
      %v698 = vadd.f32 %v675, %v688
      %v699 = vadd.f32 %v676, %v688
      %v700 = vadd.f32 %v677, %v688
      %v701 = vadd.f32 %v678, %v688
      %v702 = vadd.f32 %v679, %v688
      %v703 = vadd.f32 %v680, %v688
      %v704 = vadd.f32 %v681, %v688
      %v705 = vadd.f32 %v682, %v688
      %v706 = vmax.f32 %v690, 0.0
      %v707 = vmax.f32 %v691, 0.0
      %v708 = vmax.f32 %v692, 0.0
      %v709 = vmax.f32 %v693, 0.0
      %v710 = vmax.f32 %v694, 0.0
      %v711 = vmax.f32 %v695, 0.0
      %v712 = vmax.f32 %v696, 0.0
      %v713 = vmax.f32 %v697, 0.0
      %v714 = vmax.f32 %v698, 0.0
      %v715 = vmax.f32 %v699, 0.0
      %v716 = vmax.f32 %v700, 0.0
      %v717 = vmax.f32 %v701, 0.0
      %v718 = vmax.f32 %v702, 0.0
      %v719 = vmax.f32 %v703, 0.0
      %v720 = vmax.f32 %v704, 0.0
      %v721 = vmax.f32 %v705, 0.0
      %v722 = vpack.c.bf16 %v707, %v706
      %v723 = vpack.c.bf16 %v709, %v708
      %v724 = vpack.c.bf16 %v711, %v710
      %v725 = vpack.c.bf16 %v713, %v712
      %v726 = vpack.c.bf16 %v715, %v714
      %v727 = vpack.c.bf16 %v717, %v716
      %v728 = vpack.c.bf16 %v719, %v718
      %v729 = vpack.c.bf16 %v721, %v720
      %v738 = vunpack.c.l.b16 %v722
      %v739 = vunpack.c.h.b16 %v722
      %v740 = vunpack.c.l.b16 %v723
      %v741 = vunpack.c.h.b16 %v723
      %v742 = vunpack.c.l.b16 %v724
      %v743 = vunpack.c.h.b16 %v724
      %v744 = vunpack.c.l.b16 %v725
      %v745 = vunpack.c.h.b16 %v725
      %v746 = vunpack.c.l.b16 %v726
      %v747 = vunpack.c.h.b16 %v726
      %v748 = vunpack.c.l.b16 %v727
      %v749 = vunpack.c.h.b16 %v727
      %v750 = vunpack.c.l.b16 %v728
      %v751 = vunpack.c.h.b16 %v728
      %v752 = vunpack.c.l.b16 %v729
      %v753 = vunpack.c.h.b16 %v729
      %v754 = vpack.c.b16 %v738, %v738
      %v755 = vpack.c.b16 %v739, %v739
      %v756 = vpack.c.b16 %v740, %v740
      %v757 = vpack.c.b16 %v741, %v741
      %v758 = vpack.c.b16 %v742, %v742
      %v759 = vpack.c.b16 %v743, %v743
      %v760 = vpack.c.b16 %v744, %v744
      %v761 = vpack.c.b16 %v745, %v745
      %v762 = vpack.c.b16 %v746, %v746
      %v763 = vpack.c.b16 %v747, %v747
      %v764 = vpack.c.b16 %v748, %v748
      %v765 = vpack.c.b16 %v749, %v749
      %v766 = vpack.c.b16 %v750, %v750
      %v767 = vpack.c.b16 %v751, %v751
      %v768 = vpack.c.b16 %v752, %v752
      %v769 = vpack.c.b16 %v753, %v753
      %vm786 = vcmask 60416
      %787 = vst.msk [vmem:[%s170] sm:$0xf] %vm786, %v754
      %788 = vst.msk [vmem:[%s170 + $0x4] sm:$0xf] %vm786, %v755
      %789 = vst.msk [vmem:[%s170 + $0x8] sm:$0xf] %vm786, %v756
      %790 = vst.msk [vmem:[%s170 + $0xc] sm:$0xf] %vm786, %v757
      %791 = vst.msk [vmem:[%s170 + $0x10] sm:$0xf] %vm786, %v758
      %792 = vst.msk [vmem:[%s170 + $0x14] sm:$0xf] %vm786, %v759
      %793 = vst.msk [vmem:[%s170 + $0x18] sm:$0xf] %vm786, %v760
      %794 = vst.msk [vmem:[%s170 + $0x1c] sm:$0xf] %vm786, %v761
      %795 = vst.msk [vmem:[%s170 + $0x20] sm:$0xf] %vm786, %v762
      %796 = vst.msk [vmem:[%s170 + $0x24] sm:$0xf] %vm786, %v763
      %797 = vst.msk [vmem:[%s170 + $0x28] sm:$0xf] %vm786, %v764
      %798 = vst.msk [vmem:[%s170 + $0x2c] sm:$0xf] %vm786, %v765
      %799 = vst.msk [vmem:[%s170 + $0x30] sm:$0xf] %vm786, %v766
      %800 = vst.msk [vmem:[%s170 + $0x34] sm:$0xf] %vm786, %v767
      %801 = vst.msk [vmem:[%s170 + $0x38] sm:$0xf] %vm786, %v768
      %802 = vst.msk [vmem:[%s170 + $0x3c] sm:$0xf] %vm786, %v769
      %p803 = scmp.lt.s32.totalorder %s14, 3
      %s804 = scalar_select %p803, %s14, 3
      %s805 = smul.addr %s804, 16
      %s806 = smul.addr %s805, 4
      %s807 = scalar_lea.vmem %s3, %s806
      // Predicated region
      $region33: #{tpu_custom_call.1} parent=31 // pred_check
        %p808 = pneg %p100
      $region34: #{tpu_custom_call.1} parent=31 // pred_check_branch
        %810 = sbr.rel (%p808) target = $region36
      $region35: #{tpu_custom_call.1} parent=31 // pred_region
        _
      $region36: #{tpu_custom_call.1} parent=31 // pred_fallthru
        _
    $region32: #{tpu_custom_call.1} parent=5 // pred_fallthru
      _
    %p811 = scmp.le.s32.totalorder 2, %s9
    // Predicated region
    $region37: #{tpu_custom_call.1} parent=5 // pred_check
      %p812 = pneg %p811
    $region38: #{tpu_custom_call.1} parent=5 // pred_check_branch
      %814 = sbr.rel (%p812) target = $region40
    $region39: #{tpu_custom_call.1} parent=5 // pred_region
      %s815 = ssub.s32 %s9, 2
      // Predicated region
      $region41: #{tpu_custom_call.1} parent=39 // pred_check
        %p816 = pneg %p106
      $region42: #{tpu_custom_call.1} parent=39 // pred_check_branch
        %818 = sbr.rel (%p816) target = $region44
      $region43: #{tpu_custom_call.1} parent=39 // pred_region
        %p819 = scmp.lt.s32.totalorder %s15, 3
        %s820 = scalar_select %p819, %s15, 3
        %s821 = smul.addr %s820, 16
        %s822 = smul.addr %s821, 4
        %s823 = scalar_lea.vmem %s3, %s822
      $region44: #{tpu_custom_call.1} parent=39 // pred_fallthru
        _
    $region40: #{tpu_custom_call.1} parent=5 // pred_fallthru
      _
  $region6: #{tpu_custom_call.1} parent=0 // loop_footer
    %s13 = sadd.s32 1, %s9
  $region7: #{tpu_custom_call.1} parent=0 // loop_footer_branch
    %8 = sbr.rel target = $region3
  $region8: #{tpu_custom_call.1} parent=0 // loop_exit
    _

</llo_original>
